<compile_context>
chip_gen: v7x
topology: tpu7x:2x2x1
jax: 0.10.0
libtpu: 0.0.40
codegen_flags: <defaults>
</compile_context>

<pallas_src>
import functools

import numpy as np
import jax
import jax.numpy as jnp
from jax.experimental import pallas as pl
from jax.experimental.pallas import tpu as pltpu


# ----------------------------------------------------------------------------
# Fused ConvStem kernel: one batch element per grid step, everything in VMEM.
# ----------------------------------------------------------------------------
def _conv_stem_kernel(cols1_ref, w1_ref, s1_ref, w2_ref, s2_ref, w3_ref, b3_ref,
                      o_ref, planes_ref, *, H2, W2, C1):
    M2 = H2 * W2

    # ---- Stage 1: 3x3/s2 conv (im2col matmul) + folded-BN shift + ReLU -----
    # cols1 rows are grouped by stage-1 output (row-parity, col-parity) so the
    # result can be scattered into phase planes with unit-stride stores.
    y1 = jnp.dot(cols1_ref[...], w1_ref[...], preferred_element_type=jnp.float32)
    y1 = jnp.maximum(y1 + s1_ref[...], 0.0).astype(planes_ref.dtype)  # (4*M2, C1)

    def group(g):  # parity group g = 2*(s%2) + (t%2) of stage-1 positions (s,t)
        return y1[g * M2:(g + 1) * M2, :].reshape(H2, W2, C1)

    # Phase planes of the zero-padded stage-1 output y1pad (pad = 1):
    #   planes[2*pu + pv][a, b, :] == y1pad[2a + pu, 2b + pv, :]
    planes_ref[...] = jnp.zeros_like(planes_ref)
    planes_ref[0, 1:H2 + 1, 1:W2 + 1, :] = group(3)   # (even u, even v) <- s,t odd
    planes_ref[1, 1:H2 + 1, 0:W2, :] = group(2)       # (even u, odd  v) <- s odd, t even
    planes_ref[2, 0:H2, 1:W2 + 1, :] = group(1)       # (odd  u, even v) <- s even, t odd
    planes_ref[3, 0:H2, 0:W2, :] = group(0)           # (odd  u, odd  v) <- s,t even

    # ---- Stage 2: 3x3/s2 conv via 9 unit-stride tap windows + matmul --------
    # tap (kh,kw) reads y1pad[2i+kh, 2j+kw] = planes[2*(kh%2)+(kw%2)][i+kh//2, j+kw//2]
    taps = []
    for kh in range(3):
        for kw in range(3):
            p = 2 * (kh % 2) + (kw % 2)
            win = planes_ref[p, kh // 2:kh // 2 + H2, kw // 2:kw // 2 + W2, :]
            taps.append(win.reshape(M2, C1))
    c2 = jnp.concatenate(taps, axis=-1)               # (M2, 9*C1), never in HBM
    y2 = jnp.dot(c2, w2_ref[...], preferred_element_type=jnp.float32)
    y2 = jnp.maximum(y2 + s2_ref[...], 0.0).astype(w3_ref.dtype)

    # ---- Stage 3: 1x1 conv == matmul + bias (lane-dense output write) -------
    y3 = jnp.dot(y2, w3_ref[...], preferred_element_type=jnp.float32) + b3_ref[...]
    o_ref[...] = y3.astype(o_ref.dtype)


# ----------------------------------------------------------------------------
# Wrapper-side glue (cheap, runs once per forward under XLA)
# ----------------------------------------------------------------------------
def _torch_w_to_matmul(w_oihw):
    """(O, I, kh, kw) torch conv weight -> (kh*kw*I, O) matching im2col order."""
    O, I, KH, KW = w_oihw.shape
    return jnp.transpose(w_oihw, (2, 3, 1, 0)).reshape(KH * KW * I, O)


def _bn_fold(gamma, beta, mean, var, eps=1e-5):
    scale = gamma / jnp.sqrt(var + eps)
    shift = beta - mean * scale
    return scale, shift


def _im2col_stage1_grouped(x_nhwc, H2, W2):
    """Stage-1 im2col (k=3, s=2, p=1), rows ordered by stage-1 output parity
    groups (row-parity, col-parity) so the kernel can build stage-2 phase
    planes with unit-stride stores.  Small: only 9 * in_chans columns."""
    B, H, W, C = x_nhwc.shape
    xp = jnp.pad(x_nhwc, ((0, 0), (1, 1), (1, 1), (0, 0)))
    groups = []
    for qs in range(2):          # stage-1 output row parity
        for qt in range(2):      # stage-1 output col parity
            taps = []
            for kh in range(3):
                for kw in range(3):
                    r0, c0 = 2 * qs + kh, 2 * qt + kw
                    taps.append(xp[:, r0:r0 + 4 * H2:4, c0:c0 + 4 * W2:4, :])
            g = jnp.stack(taps, axis=-2)                 # (B, H2, W2, 9, C)
            groups.append(g.reshape(B, H2 * W2, 9 * C))
    return jnp.stack(groups, axis=1).reshape(B, 4 * H2 * W2, 9 * C)


def conv_stem_forward(x_nchw, params, *, compute_dtype=jnp.bfloat16):
    B, Cin, H, W = x_nchw.shape
    assert H % 4 == 0 and W % 4 == 0
    H2, W2 = H // 4, W // 4
    C1 = params["conv1_w"].shape[0]
    C2 = params["conv2_w"].shape[0]
    E = params["conv3_w"].shape[0]
    K1 = 9 * Cin
    M1, M2 = 4 * H2 * W2, H2 * W2

    x = jnp.transpose(x_nchw, (0, 2, 3, 1)).astype(jnp.float32)   # NCHW -> NHWC
    cols1 = _im2col_stage1_grouped(x, H2, W2).astype(compute_dtype)

    # Fold BN scale into the conv weights; only additive shift stays in-kernel.
    s1, b1 = _bn_fold(params["bn1_gamma"], params["bn1_beta"],
                      params["bn1_mean"], params["bn1_var"])
    s2, b2 = _bn_fold(params["bn2_gamma"], params["bn2_beta"],
                      params["bn2_mean"], params["bn2_var"])
    w1 = (_torch_w_to_matmul(params["conv1_w"]) * s1[None, :]).astype(compute_dtype)
    w2 = (_torch_w_to_matmul(params["conv2_w"]) * s2[None, :]).astype(compute_dtype)
    w3 = jnp.transpose(params["conv3_w"].reshape(E, C2), (1, 0)).astype(compute_dtype)
    b1r = b1.reshape(1, C1).astype(jnp.float32)
    b2r = b2.reshape(1, C2).astype(jnp.float32)
    b3r = params["conv3_b"].reshape(1, E).astype(jnp.float32)

    # Advisory cost estimate + VMEM budget (keep headroom on v7x's 64 MiB/TC).
    bpe = jnp.dtype(compute_dtype).itemsize
    flops = 2 * B * (M1 * K1 * C1 + M2 * (9 * C1) * C2 + M2 * C2 * E)
    bytes_accessed = int(M1 * K1 * B * bpe
                         + (K1 * C1 + 9 * C1 * C2 + C2 * E) * bpe
                         + B * M2 * E * 4)

    def _pad(n, m):
        return ((n + m - 1) // m) * m

    vmem_est = (
        2 * _pad(M1, 8) * _pad(K1, 128) * bpe                       # cols1 (2 bufs)
        + _pad(M1, 8) * _pad(C1, 128) * (4 + bpe)                   # y1 f32 + bf16
        + 4 * (H2 + 1) * _pad(W2 + 1, 8) * _pad(C1, 128) * bpe      # phase planes
        + _pad(M2, 8) * _pad(9 * C1, 128) * bpe                     # stage-2 im2col
        + _pad(M2, 8) * _pad(C2, 128) * (4 + bpe)                   # y2
        + 3 * _pad(M2, 8) * _pad(E, 128) * 4                        # y3 + out (2 bufs)
        + 2 * (_pad(K1, 8) * _pad(C1, 128) + _pad(9 * C1, 8) * _pad(C2, 128)
               + _pad(C2, 8) * _pad(E, 128)) * bpe)                 # weights (2 bufs)
    vmem_limit = int(min(max(2 * vmem_est, 32 * 1024 * 1024), 100 * 1024 * 1024))

    kernel = functools.partial(_conv_stem_kernel, H2=H2, W2=W2, C1=C1)
    return pl.pallas_call(
        kernel,
        out_shape=jax.ShapeDtypeStruct((B, M2, E), jnp.float32),
        grid_spec=pltpu.PrefetchScalarGridSpec(
            num_scalar_prefetch=0,
            grid=(B,),
            in_specs=[
                pl.BlockSpec((None, M1, K1), lambda b: (b, 0, 0)),   # cols1
                pl.BlockSpec((K1, C1), lambda b: (0, 0)),            # w1 (BN folded)
                pl.BlockSpec((1, C1), lambda b: (0, 0)),             # shift1
                pl.BlockSpec((9 * C1, C2), lambda b: (0, 0)),        # w2 (BN folded)
                pl.BlockSpec((1, C2), lambda b: (0, 0)),             # shift2
                pl.BlockSpec((C2, E), lambda b: (0, 0)),             # w3
                pl.BlockSpec((1, E), lambda b: (0, 0)),              # bias3
            ],
            out_specs=pl.BlockSpec((None, M2, E), lambda b: (b, 0, 0)),
            scratch_shapes=[pltpu.VMEM((4, H2 + 1, W2 + 1, C1), compute_dtype)],
        ),
        compiler_params=pltpu.CompilerParams(
            dimension_semantics=("parallel",),
            vmem_limit_bytes=vmem_limit),
        cost_estimate=pl.CostEstimate(flops=flops, transcendentals=0,
                                      bytes_accessed=bytes_accessed),
    )(cols1, w1, b1r, w2, b2r, w3, b3r)


# ----------------------------------------------------------------------------
# Pure-JAX reference (for verification)
# ----------------------------------------------------------------------------
def conv_stem_reference(x_nchw, params):
    def conv(x, w, stride, pad):
        return jax.lax.conv_general_dilated(
            x, w, (stride, stride), [(pad, pad), (pad, pad)],
            dimension_numbers=("NCHW", "OIHW", "NCHW"))

    s1, b1 = _bn_fold(params["bn1_gamma"], params["bn1_beta"],
                      params["bn1_mean"], params["bn1_var"])
    y = conv(x_nchw, params["conv1_w"], 2, 1)
    y = jnp.maximum(y * s1[None, :, None, None] + b1[None, :, None, None], 0.0)

    s2, b2 = _bn_fold(params["bn2_gamma"], params["bn2_beta"],
                      params["bn2_mean"], params["bn2_var"])
    y = conv(y, params["conv2_w"], 2, 1)
    y = jnp.maximum(y * s2[None, :, None, None] + b2[None, :, None, None], 0.0)

    y = conv(y, params["conv3_w"], 1, 0) + params["conv3_b"][None, :, None, None]
    B, E, H, W = y.shape
    return jnp.transpose(y.reshape(B, E, H * W), (0, 2, 1))


# ----------------------------------------------------------------------------
# Deterministic parameter init (shapes follow ConvStem.__init__)
# ----------------------------------------------------------------------------
def init_params(key, in_chans=3, embed_dim=32):
    C1, C2 = embed_dim // 8, embed_dim // 4
    ks = jax.random.split(key, 12)
    f32 = jnp.float32
    return {
        "conv1_w": 0.1 * jax.random.normal(ks[0], (C1, in_chans, 3, 3), f32),
        "bn1_gamma": 1.0 + 0.1 * jax.random.normal(ks[1], (C1,), f32),
        "bn1_beta": 0.1 * jax.random.normal(ks[2], (C1,), f32),
        "bn1_mean": 0.1 * jax.random.normal(ks[3], (C1,), f32),
        "bn1_var": jax.random.uniform(ks[4], (C1,), f32, 0.5, 1.5),
        "conv2_w": 0.1 * jax.random.normal(ks[5], (C2, C1, 3, 3), f32),
        "bn2_gamma": 1.0 + 0.1 * jax.random.normal(ks[6], (C2,), f32),
        "bn2_beta": 0.1 * jax.random.normal(ks[7], (C2,), f32),
        "bn2_mean": 0.1 * jax.random.normal(ks[8], (C2,), f32),
        "bn2_var": jax.random.uniform(ks[9], (C2,), f32, 0.5, 1.5),
        "conv3_w": 0.1 * jax.random.normal(ks[10], (embed_dim, C2, 1, 1), f32),
        "conv3_b": 0.1 * jax.random.normal(ks[11], (embed_dim,), f32),
    }


if __name__ == "__main__":
    # Small config consistent with ConvStem: patch_size=4, embed_dim % 8 == 0.
    B, in_chans, img_size, embed_dim = 2, 3, 16, 32

    key = jax.random.PRNGKey(0)
    kx, kp = jax.random.split(key)
    x = jax.random.normal(kx, (B, in_chans, img_size, img_size), jnp.float32)
    params = init_params(kp, in_chans=in_chans, embed_dim=embed_dim)

    fwd = jax.jit(conv_stem_forward)
    out = jax.block_until_ready(fwd(x, params))

    num_patches = (img_size // 4) ** 2
    assert out.shape == (B, num_patches, embed_dim), out.shape

    ref = jax.block_until_ready(conv_stem_reference(x, params))
    np.testing.assert_allclose(np.asarray(out), np.asarray(ref),
                               rtol=2e-2, atol=2e-2)

    print("KERNEL_OK")
</pallas_src>

<mosaic_0001>
module attributes {stable_mosaic.version = 11 : i64} {
  func.func @_conv_stem_kernel(%arg0: i32, %arg1: memref<1x64x27xbf16, #tpu.memory_space<vmem>>, %arg2: memref<27x4xbf16, #tpu.memory_space<vmem>>, %arg3: memref<1x4xf32, #tpu.memory_space<vmem>>, %arg4: memref<36x8xbf16, #tpu.memory_space<vmem>>, %arg5: memref<1x8xf32, #tpu.memory_space<vmem>>, %arg6: memref<8x32xbf16, #tpu.memory_space<vmem>>, %arg7: memref<1x32xf32, #tpu.memory_space<vmem>>, %arg8: memref<1x16x32xf32, #tpu.memory_space<vmem>>, %arg9: memref<4x5x5x4xbf16, #tpu.memory_space<vmem>>) attributes {dimension_semantics = [#tpu.dimension_semantics<parallel>], iteration_bounds = array<i64: 2>, scalar_prefetch = 0 : i64, scratch_operands = 1 : i64, tpu.core_type = #tpu.core_type<tc>, window_params = [{transform_indices = @transform_0, window_bounds = array<i64: 1, 64, 27>}, {pipeline_mode = #tpu.pipeline_mode<synchronous>, transform_indices = @transform_1, window_bounds = array<i64: 27, 4>}, {pipeline_mode = #tpu.pipeline_mode<synchronous>, transform_indices = @transform_2, window_bounds = array<i64: 1, 4>}, {pipeline_mode = #tpu.pipeline_mode<synchronous>, transform_indices = @transform_3, window_bounds = array<i64: 36, 8>}, {pipeline_mode = #tpu.pipeline_mode<synchronous>, transform_indices = @transform_4, window_bounds = array<i64: 1, 8>}, {pipeline_mode = #tpu.pipeline_mode<synchronous>, transform_indices = @transform_5, window_bounds = array<i64: 8, 32>}, {pipeline_mode = #tpu.pipeline_mode<synchronous>, transform_indices = @transform_6, window_bounds = array<i64: 1, 32>}, {transform_indices = @transform_7, window_bounds = array<i64: 1, 16, 32>}]} {
    %c0 = arith.constant 0 : index
    %c0_0 = arith.constant 0 : index
    %c0_1 = arith.constant 0 : index
    %0 = vector.load %arg1[%c0, %c0_0, %c0_1] : memref<1x64x27xbf16, #tpu.memory_space<vmem>>, vector<1x64x27xbf16>
    %1 = vector.shape_cast %0 : vector<1x64x27xbf16> to vector<64x27xbf16>
    %c0_2 = arith.constant 0 : index
    %c0_3 = arith.constant 0 : index
    %2 = vector.load %arg2[%c0_2, %c0_3] : memref<27x4xbf16, #tpu.memory_space<vmem>>, vector<27x4xbf16>
    %cst = arith.constant dense<0.000000e+00> : vector<64x4xf32>
    %3 = tpu.matmul %1, %2, %cst {dimension_numbers = #tpu.dot_dimension_numbers<[1], [0], [0], [1], [0, 0, 1, 1], [], []>} : vector<64x27xbf16>, vector<27x4xbf16>, vector<64x4xf32> -> vector<64x4xf32>
    %c0_4 = arith.constant 0 : index
    %c0_5 = arith.constant 0 : index
    %4 = vector.load %arg3[%c0_4, %c0_5] : memref<1x4xf32, #tpu.memory_space<vmem>>, vector<1x4xf32>
    %5 = vector.broadcast %4 : vector<1x4xf32> to vector<64x4xf32>
    %6 = arith.addf %3, %5 : vector<64x4xf32>
    %cst_6 = arith.constant 0.000000e+00 : f32
    %7 = vector.broadcast %cst_6 : f32 to vector<64x4xf32>
    %8 = arith.maximumf %6, %7 : vector<64x4xf32>
    %9 = arith.truncf %8 : vector<64x4xf32> to vector<64x4xbf16>
    %cst_7 = arith.constant 0.000000e+00 : bf16
    %10 = vector.broadcast %cst_7 : bf16 to vector<4x5x5x4xbf16>
    %c0_8 = arith.constant 0 : index
    %c0_9 = arith.constant 0 : index
    %c0_10 = arith.constant 0 : index
    %c0_11 = arith.constant 0 : index
    %11 = vector.load %arg9[%c0_8, %c0_9, %c0_10, %c0_11] : memref<4x5x5x4xbf16, #tpu.memory_space<vmem>>, vector<4x5x5x4xbf16>
    tpu.vector_store %arg9[%c0_8, %c0_9, %c0_10, %c0_11], %10 {strides = array<i32>} : memref<4x5x5x4xbf16, #tpu.memory_space<vmem>>, vector<4x5x5x4xbf16>,
    %12 = vector.extract_strided_slice %9 {offsets = [48, 0], sizes = [16, 4], strides = [1, 1]} : vector<64x4xbf16> to vector<16x4xbf16>
    %13 = vector.shape_cast %12 : vector<16x4xbf16> to vector<4x4x4xbf16>
    %c0_12 = arith.constant 0 : index
    %c1 = arith.constant 1 : index
    %c1_13 = arith.constant 1 : index
    %c0_14 = arith.constant 0 : index
    %14 = vector.load %arg9[%c0_12, %c1, %c1_13, %c0_14] : memref<4x5x5x4xbf16, #tpu.memory_space<vmem>>, vector<1x4x4x4xbf16>
    %15 = vector.shape_cast %14 : vector<1x4x4x4xbf16> to vector<4x4x4xbf16>
    %16 = vector.shape_cast %13 : vector<4x4x4xbf16> to vector<1x4x4x4xbf16>
    tpu.vector_store %arg9[%c0_12, %c1, %c1_13, %c0_14], %16 {strides = array<i32>} : memref<4x5x5x4xbf16, #tpu.memory_space<vmem>>, vector<1x4x4x4xbf16>,
    %17 = vector.extract_strided_slice %9 {offsets = [32, 0], sizes = [16, 4], strides = [1, 1]} : vector<64x4xbf16> to vector<16x4xbf16>
    %18 = vector.shape_cast %17 : vector<16x4xbf16> to vector<4x4x4xbf16>
    %c1_15 = arith.constant 1 : index
    %c1_16 = arith.constant 1 : index
    %c0_17 = arith.constant 0 : index
    %c0_18 = arith.constant 0 : index
    %19 = vector.load %arg9[%c1_15, %c1_16, %c0_17, %c0_18] : memref<4x5x5x4xbf16, #tpu.memory_space<vmem>>, vector<1x4x4x4xbf16>
    %20 = vector.shape_cast %19 : vector<1x4x4x4xbf16> to vector<4x4x4xbf16>
    %21 = vector.shape_cast %18 : vector<4x4x4xbf16> to vector<1x4x4x4xbf16>
    tpu.vector_store %arg9[%c1_15, %c1_16, %c0_17, %c0_18], %21 {strides = array<i32>} : memref<4x5x5x4xbf16, #tpu.memory_space<vmem>>, vector<1x4x4x4xbf16>,
    %22 = vector.extract_strided_slice %9 {offsets = [16, 0], sizes = [16, 4], strides = [1, 1]} : vector<64x4xbf16> to vector<16x4xbf16>
    %23 = vector.shape_cast %22 : vector<16x4xbf16> to vector<4x4x4xbf16>
    %c2 = arith.constant 2 : index
    %c0_19 = arith.constant 0 : index
    %c1_20 = arith.constant 1 : index
    %c0_21 = arith.constant 0 : index
    %24 = vector.load %arg9[%c2, %c0_19, %c1_20, %c0_21] : memref<4x5x5x4xbf16, #tpu.memory_space<vmem>>, vector<1x4x4x4xbf16>
    %25 = vector.shape_cast %24 : vector<1x4x4x4xbf16> to vector<4x4x4xbf16>
    %26 = vector.shape_cast %23 : vector<4x4x4xbf16> to vector<1x4x4x4xbf16>
    tpu.vector_store %arg9[%c2, %c0_19, %c1_20, %c0_21], %26 {strides = array<i32>} : memref<4x5x5x4xbf16, #tpu.memory_space<vmem>>, vector<1x4x4x4xbf16>,
    %27 = vector.extract_strided_slice %9 {offsets = [0, 0], sizes = [16, 4], strides = [1, 1]} : vector<64x4xbf16> to vector<16x4xbf16>
    %28 = vector.shape_cast %27 : vector<16x4xbf16> to vector<4x4x4xbf16>
    %c3 = arith.constant 3 : index
    %c0_22 = arith.constant 0 : index
    %c0_23 = arith.constant 0 : index
    %c0_24 = arith.constant 0 : index
    %29 = vector.load %arg9[%c3, %c0_22, %c0_23, %c0_24] : memref<4x5x5x4xbf16, #tpu.memory_space<vmem>>, vector<1x4x4x4xbf16>
    %30 = vector.shape_cast %29 : vector<1x4x4x4xbf16> to vector<4x4x4xbf16>
    %31 = vector.shape_cast %28 : vector<4x4x4xbf16> to vector<1x4x4x4xbf16>
    tpu.vector_store %arg9[%c3, %c0_22, %c0_23, %c0_24], %31 {strides = array<i32>} : memref<4x5x5x4xbf16, #tpu.memory_space<vmem>>, vector<1x4x4x4xbf16>,
    %c0_25 = arith.constant 0 : index
    %c0_26 = arith.constant 0 : index
    %c0_27 = arith.constant 0 : index
    %c0_28 = arith.constant 0 : index
    %32 = vector.load %arg9[%c0_25, %c0_26, %c0_27, %c0_28] : memref<4x5x5x4xbf16, #tpu.memory_space<vmem>>, vector<1x4x4x4xbf16>
    %33 = vector.shape_cast %32 : vector<1x4x4x4xbf16> to vector<4x4x4xbf16>
    %34 = vector.shape_cast %33 : vector<4x4x4xbf16> to vector<16x4xbf16>
    %c1_29 = arith.constant 1 : index
    %c0_30 = arith.constant 0 : index
    %c0_31 = arith.constant 0 : index
    %c0_32 = arith.constant 0 : index
    %35 = vector.load %arg9[%c1_29, %c0_30, %c0_31, %c0_32] : memref<4x5x5x4xbf16, #tpu.memory_space<vmem>>, vector<1x4x4x4xbf16>
    %36 = vector.shape_cast %35 : vector<1x4x4x4xbf16> to vector<4x4x4xbf16>
    %37 = vector.shape_cast %36 : vector<4x4x4xbf16> to vector<16x4xbf16>
    %c0_33 = arith.constant 0 : index
    %c0_34 = arith.constant 0 : index
    %c1_35 = arith.constant 1 : index
    %c0_36 = arith.constant 0 : index
    %38 = vector.load %arg9[%c0_33, %c0_34, %c1_35, %c0_36] : memref<4x5x5x4xbf16, #tpu.memory_space<vmem>>, vector<1x4x4x4xbf16>
    %39 = vector.shape_cast %38 : vector<1x4x4x4xbf16> to vector<4x4x4xbf16>
    %40 = vector.shape_cast %39 : vector<4x4x4xbf16> to vector<16x4xbf16>
    %c2_37 = arith.constant 2 : index
    %c0_38 = arith.constant 0 : index
    %c0_39 = arith.constant 0 : index
    %c0_40 = arith.constant 0 : index
    %41 = vector.load %arg9[%c2_37, %c0_38, %c0_39, %c0_40] : memref<4x5x5x4xbf16, #tpu.memory_space<vmem>>, vector<1x4x4x4xbf16>
    %42 = vector.shape_cast %41 : vector<1x4x4x4xbf16> to vector<4x4x4xbf16>
    %43 = vector.shape_cast %42 : vector<4x4x4xbf16> to vector<16x4xbf16>
    %c3_41 = arith.constant 3 : index
    %c0_42 = arith.constant 0 : index
    %c0_43 = arith.constant 0 : index
    %c0_44 = arith.constant 0 : index
    %44 = vector.load %arg9[%c3_41, %c0_42, %c0_43, %c0_44] : memref<4x5x5x4xbf16, #tpu.memory_space<vmem>>, vector<1x4x4x4xbf16>
    %45 = vector.shape_cast %44 : vector<1x4x4x4xbf16> to vector<4x4x4xbf16>
    %46 = vector.shape_cast %45 : vector<4x4x4xbf16> to vector<16x4xbf16>
    %c2_45 = arith.constant 2 : index
    %c0_46 = arith.constant 0 : index
    %c1_47 = arith.constant 1 : index
    %c0_48 = arith.constant 0 : index
    %47 = vector.load %arg9[%c2_45, %c0_46, %c1_47, %c0_48] : memref<4x5x5x4xbf16, #tpu.memory_space<vmem>>, vector<1x4x4x4xbf16>
    %48 = vector.shape_cast %47 : vector<1x4x4x4xbf16> to vector<4x4x4xbf16>
    %49 = vector.shape_cast %48 : vector<4x4x4xbf16> to vector<16x4xbf16>
    %c0_49 = arith.constant 0 : index
    %c1_50 = arith.constant 1 : index
    %c0_51 = arith.constant 0 : index
    %c0_52 = arith.constant 0 : index
    %50 = vector.load %arg9[%c0_49, %c1_50, %c0_51, %c0_52] : memref<4x5x5x4xbf16, #tpu.memory_space<vmem>>, vector<1x4x4x4xbf16>
    %51 = vector.shape_cast %50 : vector<1x4x4x4xbf16> to vector<4x4x4xbf16>
    %52 = vector.shape_cast %51 : vector<4x4x4xbf16> to vector<16x4xbf16>
    %c1_53 = arith.constant 1 : index
    %c1_54 = arith.constant 1 : index
    %c0_55 = arith.constant 0 : index
    %c0_56 = arith.constant 0 : index
    %53 = vector.load %arg9[%c1_53, %c1_54, %c0_55, %c0_56] : memref<4x5x5x4xbf16, #tpu.memory_space<vmem>>, vector<1x4x4x4xbf16>
    %54 = vector.shape_cast %53 : vector<1x4x4x4xbf16> to vector<4x4x4xbf16>
    %55 = vector.shape_cast %54 : vector<4x4x4xbf16> to vector<16x4xbf16>
    %c0_57 = arith.constant 0 : index
    %c1_58 = arith.constant 1 : index
    %c1_59 = arith.constant 1 : index
    %c0_60 = arith.constant 0 : index
    %56 = vector.load %arg9[%c0_57, %c1_58, %c1_59, %c0_60] : memref<4x5x5x4xbf16, #tpu.memory_space<vmem>>, vector<1x4x4x4xbf16>
    %57 = vector.shape_cast %56 : vector<1x4x4x4xbf16> to vector<4x4x4xbf16>
    %58 = vector.shape_cast %57 : vector<4x4x4xbf16> to vector<16x4xbf16>
    %59 = tpu.concatenate %34, %37, %40, %43, %46, %49, %52, %55, %58 in 1 : vector<16x4xbf16>, vector<16x4xbf16>, vector<16x4xbf16>, vector<16x4xbf16>, vector<16x4xbf16>, vector<16x4xbf16>, vector<16x4xbf16>, vector<16x4xbf16>, vector<16x4xbf16> -> vector<16x36xbf16>
    %c0_61 = arith.constant 0 : index
    %c0_62 = arith.constant 0 : index
    %60 = vector.load %arg4[%c0_61, %c0_62] : memref<36x8xbf16, #tpu.memory_space<vmem>>, vector<36x8xbf16>
    %cst_63 = arith.constant dense<0.000000e+00> : vector<16x8xf32>
    %61 = tpu.matmul %59, %60, %cst_63 {dimension_numbers = #tpu.dot_dimension_numbers<[1], [0], [0], [1], [0, 0, 1, 1], [], []>} : vector<16x36xbf16>, vector<36x8xbf16>, vector<16x8xf32> -> vector<16x8xf32>
    %c0_64 = arith.constant 0 : index
    %c0_65 = arith.constant 0 : index
    %62 = vector.load %arg5[%c0_64, %c0_65] : memref<1x8xf32, #tpu.memory_space<vmem>>, vector<1x8xf32>
    %63 = vector.broadcast %62 : vector<1x8xf32> to vector<16x8xf32>
    %64 = arith.addf %61, %63 : vector<16x8xf32>
    %cst_66 = arith.constant 0.000000e+00 : f32
    %65 = vector.broadcast %cst_66 : f32 to vector<16x8xf32>
    %66 = arith.maximumf %64, %65 : vector<16x8xf32>
    %67 = arith.truncf %66 : vector<16x8xf32> to vector<16x8xbf16>
    %c0_67 = arith.constant 0 : index
    %c0_68 = arith.constant 0 : index
    %68 = vector.load %arg6[%c0_67, %c0_68] : memref<8x32xbf16, #tpu.memory_space<vmem>>, vector<8x32xbf16>
    %cst_69 = arith.constant dense<0.000000e+00> : vector<16x32xf32>
    %69 = tpu.matmul %67, %68, %cst_69 {dimension_numbers = #tpu.dot_dimension_numbers<[1], [0], [0], [1], [0, 0, 1, 1], [], []>} : vector<16x8xbf16>, vector<8x32xbf16>, vector<16x32xf32> -> vector<16x32xf32>
    %c0_70 = arith.constant 0 : index
    %c0_71 = arith.constant 0 : index
    %70 = vector.load %arg7[%c0_70, %c0_71] : memref<1x32xf32, #tpu.memory_space<vmem>>, vector<1x32xf32>
    %71 = vector.broadcast %70 : vector<1x32xf32> to vector<16x32xf32>
    %72 = arith.addf %69, %71 : vector<16x32xf32>
    %c0_72 = arith.constant 0 : index
    %c0_73 = arith.constant 0 : index
    %c0_74 = arith.constant 0 : index
    %73 = vector.load %arg8[%c0_72, %c0_73, %c0_74] : memref<1x16x32xf32, #tpu.memory_space<vmem>>, vector<1x16x32xf32>
    %74 = vector.shape_cast %73 : vector<1x16x32xf32> to vector<16x32xf32>
    %75 = vector.shape_cast %72 : vector<16x32xf32> to vector<1x16x32xf32>
    tpu.vector_store %arg8[%c0_72, %c0_73, %c0_74], %75 {strides = array<i32>} : memref<1x16x32xf32, #tpu.memory_space<vmem>>, vector<1x16x32xf32>,
    return
  }
  func.func @transform_0(%arg0: i32) -> (i32, i32, i32) {
    %c0_i32 = arith.constant 0 : i32
    %c0_i32_0 = arith.constant 0 : i32
    %c0_i32_1 = arith.constant 0 : i32
    return %arg0, %c0_i32, %c0_i32_0 : i32, i32, i32
  }
  func.func @transform_1(%arg0: i32) -> (i32, i32) {
    %c0_i32 = arith.constant 0 : i32
    %c0_i32_0 = arith.constant 0 : i32
    %c0_i32_1 = arith.constant 0 : i32
    return %c0_i32, %c0_i32_0 : i32, i32
  }
  func.func @transform_2(%arg0: i32) -> (i32, i32) {
    %c0_i32 = arith.constant 0 : i32
    %c0_i32_0 = arith.constant 0 : i32
    %c0_i32_1 = arith.constant 0 : i32
    return %c0_i32, %c0_i32_0 : i32, i32
  }
  func.func @transform_3(%arg0: i32) -> (i32, i32) {
    %c0_i32 = arith.constant 0 : i32
    %c0_i32_0 = arith.constant 0 : i32
    %c0_i32_1 = arith.constant 0 : i32
    return %c0_i32, %c0_i32_0 : i32, i32
  }
  func.func @transform_4(%arg0: i32) -> (i32, i32) {
    %c0_i32 = arith.constant 0 : i32
    %c0_i32_0 = arith.constant 0 : i32
    %c0_i32_1 = arith.constant 0 : i32
    return %c0_i32, %c0_i32_0 : i32, i32
  }
  func.func @transform_5(%arg0: i32) -> (i32, i32) {
    %c0_i32 = arith.constant 0 : i32
    %c0_i32_0 = arith.constant 0 : i32
    %c0_i32_1 = arith.constant 0 : i32
    return %c0_i32, %c0_i32_0 : i32, i32
  }
  func.func @transform_6(%arg0: i32) -> (i32, i32) {
    %c0_i32 = arith.constant 0 : i32
    %c0_i32_0 = arith.constant 0 : i32
    %c0_i32_1 = arith.constant 0 : i32
    return %c0_i32, %c0_i32_0 : i32, i32
  }
  func.func @transform_7(%arg0: i32) -> (i32, i32, i32) {
    %c0_i32 = arith.constant 0 : i32
    %c0_i32_0 = arith.constant 0 : i32
    %c0_i32_1 = arith.constant 0 : i32
    return %arg0, %c0_i32, %c0_i32_0 : i32, i32, i32
  }
}

</mosaic_0001>

<llo_original>
// kernel: conv_stem_forward.1
$region0: #{conv_stem_forward.1}
  #allocation0 [shape = 'u32[]', space=smem, size = 0x4, offset = 0x4, fixed_abs, tag = 'smem constant byte address 0x4 - core index']
  #allocation1 [shape = 'u32[144,128]{1,0:T(1,128)}', space=vmem, size = 0x12000, scoped, tag = 'internal scratch']
  #allocation2 [shape = 'bf16[4,5,5,4]{3,2,1,0:T(8,128)(2,1)}', space=vmem, size = 0xa000, scoped, tag = 'scratch operand']
  %s0 = inlined_call_operand.vmem [shape: bf16[2,64,27], index: 0, kind: input, shape index: {}]
  %s1 = inlined_call_operand.vmem [shape: bf16[27,4], index: 1, kind: input, shape index: {}]
  %s2 = inlined_call_operand.vmem [shape: f32[1,4], index: 2, kind: input, shape index: {}]
  %s3 = inlined_call_operand.vmem [shape: bf16[36,8], index: 3, kind: input, shape index: {}]
  %s4 = inlined_call_operand.vmem [shape: f32[1,8], index: 4, kind: input, shape index: {}]
  %s5 = inlined_call_operand.vmem [shape: bf16[8,32], index: 5, kind: input, shape index: {}]
  %s6 = inlined_call_operand.vmem [shape: f32[1,32], index: 6, kind: input, shape index: {}]
  %s7 = inlined_call_operand.hbm [shape: f32[2,16,32], index: 7, kind: output, shape index: {}]
  %s8 = sld [smem:[#allocation0]]
  $region61: #{conv_stem_forward.1} parent=0
    _
  %s10 = ssub.s32 1, %s8
  %s11 = scalar_select 0, %s10, %s8
  $region1: #{conv_stem_forward.1} parent=0
    #allocation3 [shape = 'u8[16384]{0}', space=vmem, size = 0x4000, scoped, tag = 'output window, operand 0']
    #allocation4 [shape = 's32[2]{0}', space=sflag, size = 0x8, scoped, tag = 'scoped memory for conv_stem_forward.1']
    %12 = vsyncpa [#allocation4], 0
    %s13 = scalar_lea.sflag [#allocation4], 1
    %14 = vsyncpa %s13, 0
    loop: start=0, step=1, limit=4
    $region2: #{conv_stem_forward.1} parent=1 // loop_pre_header
      _
    $region3: #{conv_stem_forward.1} parent=1 // loop_header
      %s16 = sphi 0, %s20
      %p17 = scmp.ge.s32.totalorder %s16, 4
      %s26 = sphi 0, %s28
      %s29 = sphi 0, %s26
      %s30 = sphi 0, %s29
      %s46 = sphi 0, %s30
      %s50 = sphi 0, %s50
      %s52 = sphi 0, %s50
      %s53 = sphi 0, %s52
      %s67 = sphi 0, %s53
      %s71 = sphi 0, %s71
      %s73 = sphi 0, %s71
      %s74 = sphi 0, %s73
      %s88 = sphi 0, %s74
      %s92 = sphi 0, %s92
      %s94 = sphi 0, %s92
      %s95 = sphi 0, %s94
      %s109 = sphi 0, %s95
      %s113 = sphi 0, %s113
      %s115 = sphi 0, %s113
      %s116 = sphi 0, %s115
      %s130 = sphi 0, %s116
      %s134 = sphi 0, %s134
      %s136 = sphi 0, %s134
      %s137 = sphi 0, %s136
      %s151 = sphi 0, %s137
      %s155 = sphi 0, %s155
      %s157 = sphi 0, %s155
      %s158 = sphi 0, %s157
      %s172 = sphi 0, %s158
      %s178 = sphi 0, %s180
      %s181 = sphi 0, %s178
      %s182 = sphi 0, %s181
      %s198 = sphi 0, %s182
    $region4: #{conv_stem_forward.1} parent=1 // loop_header_branch
      %19 = sbr.rel (%p17) target = $region8
    $region5: #{conv_stem_forward.1} parent=1 // loop_body
      %s21 = ssub.s32 %s16, 1
      %s22 = ssub.s32 %s16, 2
      %s23 = sadd.s32 %s16, 1
      %s24 = ssub.s32 %s16, %s23
      %p25 = scmp.eq.s32.totalorder %s24, 0
      %s27 = sadd.s32 %s26, 1
      %s28 = scalar_select %p25, %s26, %s27
      %p31 = pneg %p25
      %p32 = scmp.eq.s32.totalorder %s16, 1
      %p33 = por %p31, %p32
      %p34 = scmp.ne.s32.totalorder %s26, %s29
      %p35 = scmp.eq.s32.totalorder %s16, 0
      %p36 = por %p34, %p35
      %p37 = scmp.ne.s32.totalorder %s26, %s29
      %p38 = scmp.eq.s32.totalorder %s21, 1
      %p39 = por %p37, %p38
      %p40 = scmp.ne.s32.totalorder %s29, %s30
      %p41 = scmp.eq.s32.totalorder %s21, 0
      %p42 = por %p40, %p41
      %p43 = scmp.ne.s32.totalorder %s29, %s30
      %p44 = scmp.eq.s32.totalorder %s22, 1
      %p45 = por %p43, %p44
      %p47 = scmp.ne.s32.totalorder %s30, %s46
      %p48 = scmp.eq.s32.totalorder %s22, 0
      %p49 = por %p47, %p48
      %s51 = sadd.s32 %s50, 1
      %p54 = scmp.eq.s32.totalorder %s16, 1
      %p55 = scmp.ne.s32.totalorder %s50, %s52
      %p56 = scmp.eq.s32.totalorder %s16, 0
      %p57 = por %p55, %p56
      %p58 = scmp.ne.s32.totalorder %s50, %s52
      %p59 = scmp.eq.s32.totalorder %s21, 1
      %p60 = por %p58, %p59
      %p61 = scmp.ne.s32.totalorder %s52, %s53
      %p62 = scmp.eq.s32.totalorder %s21, 0
      %p63 = por %p61, %p62
      %p64 = scmp.ne.s32.totalorder %s52, %s53
      %p65 = scmp.eq.s32.totalorder %s22, 1
      %p66 = por %p64, %p65
      %p68 = scmp.ne.s32.totalorder %s53, %s67
      %p69 = scmp.eq.s32.totalorder %s22, 0
      %p70 = por %p68, %p69
      %s72 = sadd.s32 %s71, 1
      %p75 = scmp.eq.s32.totalorder %s16, 1
      %p76 = scmp.ne.s32.totalorder %s71, %s73
      %p77 = scmp.eq.s32.totalorder %s16, 0
      %p78 = por %p76, %p77
      %p79 = scmp.ne.s32.totalorder %s71, %s73
      %p80 = scmp.eq.s32.totalorder %s21, 1
      %p81 = por %p79, %p80
      %p82 = scmp.ne.s32.totalorder %s73, %s74
      %p83 = scmp.eq.s32.totalorder %s21, 0
      %p84 = por %p82, %p83
      %p85 = scmp.ne.s32.totalorder %s73, %s74
      %p86 = scmp.eq.s32.totalorder %s22, 1
      %p87 = por %p85, %p86
      %p89 = scmp.ne.s32.totalorder %s74, %s88
      %p90 = scmp.eq.s32.totalorder %s22, 0
      %p91 = por %p89, %p90
      %s93 = sadd.s32 %s92, 1
      %p96 = scmp.eq.s32.totalorder %s16, 1
      %p97 = scmp.ne.s32.totalorder %s92, %s94
      %p98 = scmp.eq.s32.totalorder %s16, 0
      %p99 = por %p97, %p98
      %p100 = scmp.ne.s32.totalorder %s92, %s94
      %p101 = scmp.eq.s32.totalorder %s21, 1
      %p102 = por %p100, %p101
      %p103 = scmp.ne.s32.totalorder %s94, %s95
      %p104 = scmp.eq.s32.totalorder %s21, 0
      %p105 = por %p103, %p104
      %p106 = scmp.ne.s32.totalorder %s94, %s95
      %p107 = scmp.eq.s32.totalorder %s22, 1
      %p108 = por %p106, %p107
      %p110 = scmp.ne.s32.totalorder %s95, %s109
      %p111 = scmp.eq.s32.totalorder %s22, 0
      %p112 = por %p110, %p111
      %s114 = sadd.s32 %s113, 1
      %p117 = scmp.eq.s32.totalorder %s16, 1
      %p118 = scmp.ne.s32.totalorder %s113, %s115
      %p119 = scmp.eq.s32.totalorder %s16, 0
      %p120 = por %p118, %p119
      %p121 = scmp.ne.s32.totalorder %s113, %s115
      %p122 = scmp.eq.s32.totalorder %s21, 1
      %p123 = por %p121, %p122
      %p124 = scmp.ne.s32.totalorder %s115, %s116
      %p125 = scmp.eq.s32.totalorder %s21, 0
      %p126 = por %p124, %p125
      %p127 = scmp.ne.s32.totalorder %s115, %s116
      %p128 = scmp.eq.s32.totalorder %s22, 1
      %p129 = por %p127, %p128
      %p131 = scmp.ne.s32.totalorder %s116, %s130
      %p132 = scmp.eq.s32.totalorder %s22, 0
      %p133 = por %p131, %p132
      %s135 = sadd.s32 %s134, 1
      %p138 = scmp.eq.s32.totalorder %s16, 1
      %p139 = scmp.ne.s32.totalorder %s134, %s136
      %p140 = scmp.eq.s32.totalorder %s16, 0
      %p141 = por %p139, %p140
      %p142 = scmp.ne.s32.totalorder %s134, %s136
      %p143 = scmp.eq.s32.totalorder %s21, 1
      %p144 = por %p142, %p143
      %p145 = scmp.ne.s32.totalorder %s136, %s137
      %p146 = scmp.eq.s32.totalorder %s21, 0
      %p147 = por %p145, %p146
      %p148 = scmp.ne.s32.totalorder %s136, %s137
      %p149 = scmp.eq.s32.totalorder %s22, 1
      %p150 = por %p148, %p149
      %p152 = scmp.ne.s32.totalorder %s137, %s151
      %p153 = scmp.eq.s32.totalorder %s22, 0
      %p154 = por %p152, %p153
      %s156 = sadd.s32 %s155, 1
      %p159 = scmp.eq.s32.totalorder %s16, 1
      %p160 = scmp.ne.s32.totalorder %s155, %s157
      %p161 = scmp.eq.s32.totalorder %s16, 0
      %p162 = por %p160, %p161
      %p163 = scmp.ne.s32.totalorder %s155, %s157
      %p164 = scmp.eq.s32.totalorder %s21, 1
      %p165 = por %p163, %p164
      %p166 = scmp.ne.s32.totalorder %s157, %s158
      %p167 = scmp.eq.s32.totalorder %s21, 0
      %p168 = por %p166, %p167
      %p169 = scmp.ne.s32.totalorder %s157, %s158
      %p170 = scmp.eq.s32.totalorder %s22, 1
      %p171 = por %p169, %p170
      %p173 = scmp.ne.s32.totalorder %s158, %s172
      %p174 = scmp.eq.s32.totalorder %s22, 0
      %p175 = por %p173, %p174
      %s176 = ssub.s32 %s16, %s23
      %p177 = scmp.eq.s32.totalorder %s176, 0
      %s179 = sadd.s32 %s178, 1
      %s180 = scalar_select %p177, %s178, %s179
      %p183 = pneg %p177
      %p184 = scmp.eq.s32.totalorder %s16, 1
      %p185 = por %p183, %p184
      %p186 = scmp.ne.s32.totalorder %s178, %s181
      %p187 = scmp.eq.s32.totalorder %s16, 0
      %p188 = por %p186, %p187
      %p189 = scmp.ne.s32.totalorder %s178, %s181
      %p190 = scmp.eq.s32.totalorder %s21, 1
      %p191 = por %p189, %p190
      %p192 = scmp.ne.s32.totalorder %s181, %s182
      %p193 = scmp.eq.s32.totalorder %s21, 0
      %p194 = por %p192, %p193
      %p195 = scmp.ne.s32.totalorder %s181, %s182
      %p196 = scmp.eq.s32.totalorder %s22, 1
      %p197 = por %p195, %p196
      %p199 = scmp.ne.s32.totalorder %s182, %s198
      %p200 = scmp.eq.s32.totalorder %s22, 0
      %p201 = por %p199, %p200
      %p202 = scmp.le.s32.totalorder 1, %s16
      %p203 = scmp.lt.s32.totalorder %s16, 3
      %p204 = pnand %p202, %p203
      %p205 = pneg %p204
      // Predicated region
      $region9: #{conv_stem_forward.1} parent=5 // pred_check
        _
      $region10: #{conv_stem_forward.1} parent=5 // pred_check_branch
        %207 = sbr.rel (%p204) target = $region12
      $region11: #{conv_stem_forward.1} parent=5 // pred_region
        %s208 = ssub.s32 %s16, 1
        // Predicated region
        $region13: #{conv_stem_forward.1} parent=11 // pred_check
          %p209 = pneg %p63
        $region14: #{conv_stem_forward.1} parent=11 // pred_check_branch
          %211 = sbr.rel (%p209) target = $region16
        $region15: #{conv_stem_forward.1} parent=11 // pred_region
          _
        $region16: #{conv_stem_forward.1} parent=11 // pred_fallthru
          _
        // Predicated region
        $region17: #{conv_stem_forward.1} parent=11 // pred_check
          %p212 = pneg %p84
        $region18: #{conv_stem_forward.1} parent=11 // pred_check_branch
          %214 = sbr.rel (%p212) target = $region20
        $region19: #{conv_stem_forward.1} parent=11 // pred_region
          _
        $region20: #{conv_stem_forward.1} parent=11 // pred_fallthru
          _
        // Predicated region
        $region21: #{conv_stem_forward.1} parent=11 // pred_check
          %p215 = pneg %p105
        $region22: #{conv_stem_forward.1} parent=11 // pred_check_branch
          %217 = sbr.rel (%p215) target = $region24
        $region23: #{conv_stem_forward.1} parent=11 // pred_region
          _
        $region24: #{conv_stem_forward.1} parent=11 // pred_fallthru
          _
        // Predicated region
        $region25: #{conv_stem_forward.1} parent=11 // pred_check
          %p218 = pneg %p126
        $region26: #{conv_stem_forward.1} parent=11 // pred_check_branch
          %220 = sbr.rel (%p218) target = $region28
        $region27: #{conv_stem_forward.1} parent=11 // pred_region
          _
        $region28: #{conv_stem_forward.1} parent=11 // pred_fallthru
          _
        // Predicated region
        $region29: #{conv_stem_forward.1} parent=11 // pred_check
          %p221 = pneg %p147
        $region30: #{conv_stem_forward.1} parent=11 // pred_check_branch
          %223 = sbr.rel (%p221) target = $region32
        $region31: #{conv_stem_forward.1} parent=11 // pred_region
          _
        $region32: #{conv_stem_forward.1} parent=11 // pred_fallthru
          _
        // Predicated region
        $region33: #{conv_stem_forward.1} parent=11 // pred_check
          %p224 = pneg %p168
        $region34: #{conv_stem_forward.1} parent=11 // pred_check_branch
          %226 = sbr.rel (%p224) target = $region36
        $region35: #{conv_stem_forward.1} parent=11 // pred_region
          _
        $region36: #{conv_stem_forward.1} parent=11 // pred_fallthru
          _
      $region12: #{conv_stem_forward.1} parent=5 // pred_fallthru
        _
      %p227 = scmp.lt.s32.totalorder %s16, 2
      // Predicated region
      $region37: #{conv_stem_forward.1} parent=5 // pred_check
        %p228 = pneg %p227
      $region38: #{conv_stem_forward.1} parent=5 // pred_check_branch
        %230 = sbr.rel (%p228) target = $region40
      $region39: #{conv_stem_forward.1} parent=5 // pred_region
        // Predicated region
        $region41: #{conv_stem_forward.1} parent=39 // pred_check
          %p231 = pneg %p36
        $region42: #{conv_stem_forward.1} parent=39 // pred_check_branch
          %233 = sbr.rel (%p231) target = $region44
        $region43: #{conv_stem_forward.1} parent=39 // pred_region
          %p234 = scmp.lt.s32.totalorder %s16, 1
          %s235 = scalar_select %p234, %s16, 1
          %s236 = smul.addr %s235, 8
          %s237 = smul.addr %s236, 4
          %s238 = scalar_lea.vmem %s0, %s237
        $region44: #{conv_stem_forward.1} parent=39 // pred_fallthru
          _
      $region40: #{conv_stem_forward.1} parent=5 // pred_fallthru
        _
      %p239 = scmp.le.s32.totalorder 1, %s16
      %p240 = scmp.lt.s32.totalorder %s16, 3
      %p241 = pnand %p239, %p240
      %p242 = pneg %p241
      // Predicated region
      $region45: #{conv_stem_forward.1} parent=5 // pred_check
        _
      $region46: #{conv_stem_forward.1} parent=5 // pred_check_branch
        %244 = sbr.rel (%p241) target = $region48
      $region47: #{conv_stem_forward.1} parent=5 // pred_region
        %s245 = ssub.s32 %s16, 1
        %p246 = scmp.lt.s32.totalorder %s21, 1
        %s247 = scalar_select %p246, %s21, 1
        %s248 = smul.addr %s247, 8
        %s249 = smul.addr %s248, 4
        %s250 = scalar_lea.vmem %s0, %s249
        %p251 = pneg %p42
        %p252 = pneg %p39
        %p253 = pneg %p63
        %p254 = pneg %p60
        %p255 = pneg %p84
        %p256 = pneg %p81
        %p257 = pneg %p105
        %p258 = pneg %p102
        %p259 = pneg %p126
        %p260 = pneg %p123
        %p261 = pneg %p147
        %p262 = pneg %p144
        %p263 = pneg %p168
        %p264 = pneg %p165
        %p265 = pneg %p194
        %p266 = pneg %p191
        %s267 = sand.u32 %s181, 1
        %s268 = scalar_lea.sflag [#allocation4], %s267
        %s269 = sand.u32 %s181, 1
        %s270 = smul.addr %s269, 16
        %s271 = scalar_lea.vmem [#allocation3], %s270
        %p272 = scmp.lt.s32.totalorder %s21, 1
        %s273 = scalar_select %p272, %s21, 1
        %s274 = smul.addr %s273, 8
        %s275 = smul.addr %s274, 4
        %s276 = scalar_lea.vmem %s0, %s275
        %v278 = vld [vmem:[%s276] sm:$0xf]
        %v279 = vld [vmem:[%s276 + $0x4] sm:$0xf]
        %v280 = vld [vmem:[%s276 + $0x8] sm:$0xf]
        %v281 = vld [vmem:[%s276 + $0xc] sm:$0xf]
        %v282 = vld [vmem:[%s276 + $0x10] sm:$0xf]
        %v283 = vld [vmem:[%s276 + $0x14] sm:$0xf]
        %v284 = vld [vmem:[%s276 + $0x18] sm:$0xf]
        %v285 = vld [vmem:[%s276 + $0x1c] sm:$0xf]
        %v286 = vld [vmem:[%s1] sm:$0xf]
        %v287 = vld [vmem:[%s1 + $0x4] sm:$0xf]
        %v288 = vld [vmem:[%s1 + $0x8] sm:$0xf]
        %v289 = vld [vmem:[%s1 + $0xc] sm:$0x3]
        %v290 = vld [vmem:[%s2] sm:$0x1]
        %v292 = vlaneseq
        %v293 = vshrl.u32 %v292, 7
        %v294 = vsub.s32 0, %v293
        %v295 = vrot.slane %v290, %v294
        %v305 = vunpack.c.l.b16 %v278
        %v306 = vunpack.c.l.b16 %v279
        %v307 = vunpack.c.l.b16 %v280
        %v308 = vunpack.c.l.b16 %v281
        %v309 = vunpack.c.l.b16 %v282
        %v310 = vunpack.c.l.b16 %v283
        %v311 = vunpack.c.l.b16 %v284
        %v312 = vunpack.c.l.b16 %v285
        %v313 = vpack.c.b16 %v306, %v305
        %v314 = vpack.c.b16 %v308, %v307
        %v315 = vpack.c.b16 %v310, %v309
        %v316 = vpack.c.b16 %v312, %v311
        %v321 = vunpack.c.l.b16 %v286
        %v322 = vunpack.c.l.b16 %v287
        %v323 = vunpack.c.l.b16 %v288
        %v324 = vunpack.c.l.b16 %v289
        %v325 = vpack.c.b16 %v322, %v321
        %v326 = vpack.c.b16 %v324, %v323
        %vm328 = vcmask 220160
        %v330 = vsel %vm328, %v313, 0
        %v333 = vsel %vm328, %v314, 0
        %v336 = vsel %vm328, %v315, 0
        %v339 = vsel %vm328, %v316, 0
        %vm341 = vcmask 1044480
        %vm342 = vcmask 1045504
        %v343 = vsel %vm341, 4294967295, 65535
        %v344 = vsel %vm342, %v343, 0
        %v346 = vand.u32 %v326, %v344
        %348 = vmatprep.subr.bf16.mxu0 0
        %349 = vmatpush1.bf16.msra.mxu0 %v325
        %350 = vmatprep.subr.bf16.mxu0 0
        %351 = vmatpush1.bf16.msra.mxu0 %v346
        %352 = vmatprep.subr.bf16.mxu0 0
        %353 = vmatpush1.bf16.msra.mxu0 0
        %354 = vmatprep.subr.bf16.mxu0 0
        %355 = vmatpush1.bf16.msra.mxu0 0
        %356 = vmatprep.subr.bf16.mxu0 0
        %357 = vmatpush1.bf16.msra.mxu0 0
        %358 = vmatprep.subr.bf16.mxu0 0
        %359 = vmatpush1.bf16.msra.mxu0 0
        %360 = vmatprep.subr.bf16.mxu0 0
        %361 = vmatpush1.bf16.msra.mxu0 0
        %362 = vmatprep.subr.bf16.mxu0 0
        %363 = vmatpush1.bf16.msra.mxu0 0
        %364 = vmatprep.subr.bf16.mxu0 0
        %365 = vmatpush1.bf16.msra.mxu0 0
        %366 = vmatprep.subr.bf16.mxu0 0
        %367 = vmatpush1.bf16.msra.mxu0 0
        %368 = vmatprep.subr.bf16.mxu0 0
        %369 = vmatpush1.bf16.msra.mxu0 0
        %370 = vmatprep.subr.bf16.mxu0 0
        %371 = vmatpush1.bf16.msra.mxu0 0
        %372 = vmatprep.subr.bf16.mxu0 0
        %373 = vmatpush1.bf16.msra.mxu0 0
        %374 = vmatprep.subr.bf16.mxu0 0
        %375 = vmatpush1.bf16.msra.mxu0 0
        %376 = vmatprep.subr.bf16.mxu0 0
        %377 = vmatpush1.bf16.msra.mxu0 0
        %378 = vmatprep.subr.bf16.mxu0 0
        %379 = vmatpush1.bf16.msra.mxu0 0
        %380 = vmatprep.mubr.bf16.mxu0 0
        %381 = vmatmul.mubr.bf16.gmra.mrb[0].mxu0 %v330
        %v382 = vpop.f32.mrb[0].mxu0
        %v383 = vadd.f32 %v295, %v382
        %v384 = vpop.f32.mrb[0].mxu0
        %v385 = vpop.f32.mrb[0].mxu0
        %v386 = vadd.f32 %v295, %v385
        %v387 = vpop.f32.mrb[0].mxu0
        %388 = vmatprep.mubr.bf16.mxu0 0
        %389 = vmatmul.mubr.bf16.gmra.mrb[0].mxu0 %v333
        %v390 = vpop.f32.mrb[0].mxu0
        %v391 = vadd.f32 %v295, %v390
        %v392 = vpop.f32.mrb[0].mxu0
        %v393 = vpop.f32.mrb[0].mxu0
        %v394 = vadd.f32 %v295, %v393
        %v395 = vpop.f32.mrb[0].mxu0
        %396 = vmatprep.mubr.bf16.mxu0 0
        %397 = vmatmul.mubr.bf16.gmra.mrb[0].mxu0 %v336
        %v398 = vpop.f32.mrb[0].mxu0
        %v399 = vadd.f32 %v295, %v398
        %v400 = vpop.f32.mrb[0].mxu0
        %v401 = vpop.f32.mrb[0].mxu0
        %v402 = vadd.f32 %v295, %v401
        %v403 = vpop.f32.mrb[0].mxu0
        %404 = vmatprep.mubr.bf16.mxu0 0
        %405 = vmatmul.mubr.bf16.gmra.mrb[0].mxu0 %v339
        %v406 = vpop.f32.mrb[0].mxu0
        %v407 = vadd.f32 %v295, %v406
        %v408 = vpop.f32.mrb[0].mxu0
        %v409 = vpop.f32.mrb[0].mxu0
        %v410 = vadd.f32 %v295, %v409
        %v411 = vpop.f32.mrb[0].mxu0
        %412 = vdwg.mxu0
        %v413 = vmax.f32 %v383, 0.0
        %v414 = vmax.f32 %v386, 0.0
        %v415 = vmax.f32 %v391, 0.0
        %v416 = vmax.f32 %v394, 0.0
        %v417 = vmax.f32 %v399, 0.0
        %v418 = vmax.f32 %v402, 0.0
        %v419 = vmax.f32 %v407, 0.0
        %v420 = vmax.f32 %v410, 0.0
        %v421 = vpack.c.bf16 %v414, %v413
        %v422 = vpack.c.bf16 %v416, %v415
        %v423 = vpack.c.bf16 %v418, %v417
        %v424 = vpack.c.bf16 %v420, %v419
        %vm425 = vcmask 26624
        %vm426 = vsmask.f32 2304
        %vm427 = vmand %vm425, %vm426
        %v428 = vld [vmem:[#allocation2] sm:$0x7]
        %v429 = vsel %vm427, 0, %v428
        %430 = vst [vmem:[#allocation2] sm:$0x7] %v429
        %v431 = vld [vmem:[#allocation2 + $0x4] sm:$0x7]
        %v432 = vsel %vm427, 0, %v431
        %433 = vst [vmem:[#allocation2 + $0x4] sm:$0x7] %v432
        %v434 = vld [vmem:[#allocation2 + $0x8] sm:$0x7]
        %v435 = vsel %vm427, 0, %v434
        %436 = vst [vmem:[#allocation2 + $0x8] sm:$0x7] %v435
        %v437 = vld [vmem:[#allocation2 + $0xc] sm:$0x7]
        %v438 = vsel %vm427, 0, %v437
        %439 = vst [vmem:[#allocation2 + $0xc] sm:$0x7] %v438
        %v440 = vld [vmem:[#allocation2 + $0x10] sm:$0x7]
        %v441 = vsel %vm427, 0, %v440
        %442 = vst [vmem:[#allocation2 + $0x10] sm:$0x7] %v441
        %v443 = vld [vmem:[#allocation2 + $0x14] sm:$0x7]
        %v444 = vsel %vm427, 0, %v443
        %445 = vst [vmem:[#allocation2 + $0x14] sm:$0x7] %v444
        %v446 = vld [vmem:[#allocation2 + $0x18] sm:$0x7]
        %v447 = vsel %vm427, 0, %v446
        %448 = vst [vmem:[#allocation2 + $0x18] sm:$0x7] %v447
        %v449 = vld [vmem:[#allocation2 + $0x1c] sm:$0x7]
        %v450 = vsel %vm427, 0, %v449
        %451 = vst [vmem:[#allocation2 + $0x1c] sm:$0x7] %v450
        %v452 = vld [vmem:[#allocation2 + $0x20] sm:$0x7]
        %v453 = vsel %vm427, 0, %v452
        %454 = vst [vmem:[#allocation2 + $0x20] sm:$0x7] %v453
        %v455 = vld [vmem:[#allocation2 + $0x24] sm:$0x7]
        %v456 = vsel %vm427, 0, %v455
        %457 = vst [vmem:[#allocation2 + $0x24] sm:$0x7] %v456
        %v458 = vld [vmem:[#allocation2 + $0x28] sm:$0x7]
        %v459 = vsel %vm427, 0, %v458
        %460 = vst [vmem:[#allocation2 + $0x28] sm:$0x7] %v459
        %v461 = vld [vmem:[#allocation2 + $0x2c] sm:$0x7]
        %v462 = vsel %vm427, 0, %v461
        %463 = vst [vmem:[#allocation2 + $0x2c] sm:$0x7] %v462
        %v464 = vld [vmem:[#allocation2 + $0x30] sm:$0x7]
        %v465 = vsel %vm427, 0, %v464
        %466 = vst [vmem:[#allocation2 + $0x30] sm:$0x7] %v465
        %v467 = vld [vmem:[#allocation2 + $0x34] sm:$0x7]
        %v468 = vsel %vm427, 0, %v467
        %469 = vst [vmem:[#allocation2 + $0x34] sm:$0x7] %v468
        %v470 = vld [vmem:[#allocation2 + $0x38] sm:$0x7]
        %v471 = vsel %vm427, 0, %v470
        %472 = vst [vmem:[#allocation2 + $0x38] sm:$0x7] %v471
        %v473 = vld [vmem:[#allocation2 + $0x3c] sm:$0x7]
        %v474 = vsel %vm427, 0, %v473
        %475 = vst [vmem:[#allocation2 + $0x3c] sm:$0x7] %v474
        %v476 = vld [vmem:[#allocation2 + $0x40] sm:$0x7]
        %v477 = vsel %vm427, 0, %v476
        %478 = vst [vmem:[#allocation2 + $0x40] sm:$0x7] %v477
        %v479 = vld [vmem:[#allocation2 + $0x44] sm:$0x7]
        %v480 = vsel %vm427, 0, %v479
        %481 = vst [vmem:[#allocation2 + $0x44] sm:$0x7] %v480
        %v482 = vld [vmem:[#allocation2 + $0x48] sm:$0x7]
        %v483 = vsel %vm427, 0, %v482
        %484 = vst [vmem:[#allocation2 + $0x48] sm:$0x7] %v483
        %v485 = vld [vmem:[#allocation2 + $0x4c] sm:$0x7]
        %v486 = vsel %vm427, 0, %v485
        %487 = vst [vmem:[#allocation2 + $0x4c] sm:$0x7] %v486
        %v489 = vcombine.high %v424, %v424
        %v491 = vunpack.c.l.s4 1983009808
        %v492 = vunpack.c.0.s8 %v491
        %v493 = vlaneseq
        %v494 = vshrl.u32 %v493, 7
        %v495 = vsub.s32 %v492, %v494
        %v496 = vrot.slane %v424, %v495
        %v498 = vunpack.c.l.s4 1983009808
        %v499 = vunpack.c.0.s8 %v498
        %v500 = vlaneseq
        %v501 = vshrl.u32 %v500, 7
        %v502 = vsub.s32 %v499, %v501
        %v503 = vrot.slane %v489, %v502
        %v504 = vcombine.high %v496, %v496
        %v505 = vcombine.high %v503, %v503
        %v507 = vunpack.c.l.s4 1983009808
        %v508 = vunpack.c.0.s8 %v507
        %v509 = vlaneseq
        %v510 = vshrl.u32 %v509, 7
        %v511 = vsub.s32 %v508, %v510
        %v512 = vrot.slane %v496, %v511
        %v514 = vunpack.c.l.s4 1983009808
        %v515 = vunpack.c.0.s8 %v514
        %v516 = vlaneseq
        %v517 = vshrl.u32 %v516, 7
        %v518 = vsub.s32 %v515, %v517
        %v519 = vrot.slane %v504, %v518
        %v521 = vunpack.c.l.s4 1983009808
        %v522 = vunpack.c.0.s8 %v521
        %v523 = vlaneseq
        %v524 = vshrl.u32 %v523, 7
        %v525 = vsub.s32 %v522, %v524
        %v526 = vrot.slane %v503, %v525
        %v528 = vunpack.c.l.s4 1983009808
        %v529 = vunpack.c.0.s8 %v528
        %v530 = vlaneseq
        %v531 = vshrl.u32 %v530, 7
        %v532 = vsub.s32 %v529, %v531
        %v533 = vrot.slane %v505, %v532
        %v535 = vshrl.u32 %v512, 16
        %v537 = vrot.slane %v535, 7
        %v538 = vshll.u32 %v512, 16
        %v540 = vor.u32 %v537, %v538
        %v542 = vshrl.u32 %v519, 16
        %v544 = vrot.slane %v542, 7
        %v545 = vshll.u32 %v519, 16
        %v547 = vor.u32 %v544, %v545
        %v549 = vshrl.u32 %v526, 16
        %v551 = vrot.slane %v549, 7
        %v552 = vshll.u32 %v526, 16
        %v554 = vor.u32 %v551, %v552
        %v556 = vshrl.u32 %v533, 16
        %v558 = vrot.slane %v556, 7
        %v559 = vshll.u32 %v533, 16
        %v561 = vor.u32 %v558, %v559
        %s566 = scalar_lea.vmem [#allocation2], 4
        %vm567 = vsmask.f32 2306
        %vm568 = vmand %vm425, %vm567
        %v569 = vld [vmem:[%s566] sm:$0x7]
        %v570 = vsel %vm568, %v540, %v569
        %571 = vst [vmem:[%s566] sm:$0x7] %v570
        %v572 = vld [vmem:[%s566 + $0x4] sm:$0x7]
        %v573 = vsel %vm568, %v547, %v572
        %574 = vst [vmem:[%s566 + $0x4] sm:$0x7] %v573
        %v575 = vld [vmem:[%s566 + $0x8] sm:$0x7]
        %v576 = vsel %vm568, %v554, %v575
        %577 = vst [vmem:[%s566 + $0x8] sm:$0x7] %v576
        %v578 = vld [vmem:[%s566 + $0xc] sm:$0x7]
        %v579 = vsel %vm568, %v561, %v578
        %580 = vst [vmem:[%s566 + $0xc] sm:$0x7] %v579
        %v582 = vcombine.high %v423, %v423
        %v584 = vunpack.c.l.s4 1983009808
        %v585 = vunpack.c.0.s8 %v584
        %v586 = vlaneseq
        %v587 = vshrl.u32 %v586, 7
        %v588 = vsub.s32 %v585, %v587
        %v589 = vrot.slane %v423, %v588
        %v591 = vunpack.c.l.s4 1983009808
        %v592 = vunpack.c.0.s8 %v591
        %v593 = vlaneseq
        %v594 = vshrl.u32 %v593, 7
        %v595 = vsub.s32 %v592, %v594
        %v596 = vrot.slane %v582, %v595
        %v597 = vcombine.high %v589, %v589
        %v598 = vcombine.high %v596, %v596
        %s603 = scalar_lea.vmem [#allocation2], 24
        %vm604 = vcmask 25600
        %605 = vst.msk [vmem:[%s603] sm:$0x3] %vm604, %v589
        %606 = vst.msk [vmem:[%s603 + $0x4] sm:$0x3] %vm604, %v597
        %607 = vst.msk [vmem:[%s603 + $0x8] sm:$0x3] %vm604, %v596
        %608 = vst.msk [vmem:[%s603 + $0xc] sm:$0x3] %vm604, %v598
        %v610 = vcombine.high %v422, %v422
        %v612 = vunpack.c.l.s4 1983009808
        %v613 = vunpack.c.0.s8 %v612
        %v614 = vlaneseq
        %v615 = vshrl.u32 %v614, 7
        %v616 = vsub.s32 %v613, %v615
        %v617 = vrot.slane %v422, %v616
        %v619 = vunpack.c.l.s4 1983009808
        %v620 = vunpack.c.0.s8 %v619
        %v621 = vlaneseq
        %v622 = vshrl.u32 %v621, 7
        %v623 = vsub.s32 %v620, %v622
        %v624 = vrot.slane %v610, %v623
        %v625 = vcombine.high %v617, %v617
        %v626 = vcombine.high %v624, %v624
        %v628 = vunpack.c.l.s4 1983009808
        %v629 = vunpack.c.0.s8 %v628
        %v630 = vlaneseq
        %v631 = vshrl.u32 %v630, 7
        %v632 = vsub.s32 %v629, %v631
        %v633 = vrot.slane %v617, %v632
        %v635 = vunpack.c.l.s4 1983009808
        %v636 = vunpack.c.0.s8 %v635
        %v637 = vlaneseq
        %v638 = vshrl.u32 %v637, 7
        %v639 = vsub.s32 %v636, %v638
        %v640 = vrot.slane %v625, %v639
        %v642 = vunpack.c.l.s4 1983009808
        %v643 = vunpack.c.0.s8 %v642
        %v644 = vlaneseq
        %v645 = vshrl.u32 %v644, 7
        %v646 = vsub.s32 %v643, %v645
        %v647 = vrot.slane %v624, %v646
        %v649 = vunpack.c.l.s4 1983009808
        %v650 = vunpack.c.0.s8 %v649
        %v651 = vlaneseq
        %v652 = vshrl.u32 %v651, 7
        %v653 = vsub.s32 %v650, %v652
        %v654 = vrot.slane %v626, %v653
        %v656 = vshrl.u32 %v633, 16
        %v658 = vrot.slane %v656, 7
        %v659 = vshll.u32 %v633, 16
        %v661 = vor.u32 %v658, %v659
        %v663 = vshrl.u32 %v640, 16
        %v665 = vrot.slane %v663, 7
        %v666 = vshll.u32 %v640, 16
        %v668 = vor.u32 %v665, %v666
        %v670 = vshrl.u32 %v647, 16
        %v672 = vrot.slane %v670, 7
        %v673 = vshll.u32 %v647, 16
        %v675 = vor.u32 %v672, %v673
        %v677 = vshrl.u32 %v654, 16
        %v679 = vrot.slane %v677, 7
        %v680 = vshll.u32 %v654, 16
        %v682 = vor.u32 %v679, %v680
        %s687 = scalar_lea.vmem [#allocation2], 40
        %v688 = vld [vmem:[%s687] sm:$0x7]
        %v689 = vsel %vm568, %v661, %v688
        %690 = vst [vmem:[%s687] sm:$0x7] %v689
        %v691 = vld [vmem:[%s687 + $0x4] sm:$0x7]
        %v692 = vsel %vm568, %v668, %v691
        %693 = vst [vmem:[%s687 + $0x4] sm:$0x7] %v692
        %v694 = vld [vmem:[%s687 + $0x8] sm:$0x7]
        %v695 = vsel %vm568, %v675, %v694
        %696 = vst [vmem:[%s687 + $0x8] sm:$0x7] %v695
        %v697 = vld [vmem:[%s687 + $0xc] sm:$0x7]
        %v698 = vsel %vm568, %v682, %v697
        %699 = vst [vmem:[%s687 + $0xc] sm:$0x7] %v698
        %v701 = vcombine.high %v421, %v421
        %v703 = vunpack.c.l.s4 1983009808
        %v704 = vunpack.c.0.s8 %v703
        %v705 = vlaneseq
        %v706 = vshrl.u32 %v705, 7
        %v707 = vsub.s32 %v704, %v706
        %v708 = vrot.slane %v421, %v707
        %v710 = vunpack.c.l.s4 1983009808
        %v711 = vunpack.c.0.s8 %v710
        %v712 = vlaneseq
        %v713 = vshrl.u32 %v712, 7
        %v714 = vsub.s32 %v711, %v713
        %v715 = vrot.slane %v701, %v714
        %v716 = vcombine.high %v708, %v708
        %v717 = vcombine.high %v715, %v715
        %s722 = scalar_lea.vmem [#allocation2], 60
        %723 = vst.msk [vmem:[%s722] sm:$0x3] %vm604, %v708
        %724 = vst.msk [vmem:[%s722 + $0x4] sm:$0x3] %vm604, %v716
        %725 = vst.msk [vmem:[%s722 + $0x8] sm:$0x3] %vm604, %v715
        %726 = vst.msk [vmem:[%s722 + $0xc] sm:$0x3] %vm604, %v717
        %v727 = vld [vmem:[#allocation2] sm:$0x3]
        %v728 = vld [vmem:[#allocation2 + $0x4] sm:$0x3]
        %v729 = vld [vmem:[#allocation2 + $0x8] sm:$0x3]
        %v730 = vld [vmem:[#allocation2 + $0xc] sm:$0x3]
        %s731 = scalar_lea.vmem [#allocation2], 20
        %v732 = vld [vmem:[%s731] sm:$0x3]
        %v733 = vld [vmem:[%s731 + $0x4] sm:$0x3]
        %v734 = vld [vmem:[%s731 + $0x8] sm:$0x3]
        %v735 = vld [vmem:[%s731 + $0xc] sm:$0x3]
        %v736 = vld [vmem:[#allocation2] sm:$0x7]
        %v737 = vld [vmem:[#allocation2 + $0x4] sm:$0x7]
        %v738 = vld [vmem:[#allocation2 + $0x8] sm:$0x7]
        %v739 = vld [vmem:[#allocation2 + $0xc] sm:$0x7]
        %v745 = vunpack.c.l.s4 1983009808
        %v746 = vunpack.c.0.s8 %v745
        %v747 = vlaneseq
        %v748 = vshrl.u32 %v747, 7
        %v749 = vsub.s32 %v746, %v748
        %v750 = vrot.slane %v736, %v749
        %v751 = vcombine.high %v750, %v750
        %v753 = vunpack.c.l.s4 1983009808
        %v754 = vunpack.c.0.s8 %v753
        %v755 = vlaneseq
        %v756 = vshrl.u32 %v755, 7
        %v757 = vsub.s32 %v754, %v756
        %v758 = vrot.slane %v737, %v757
        %v759 = vcombine.high %v758, %v758
        %v761 = vunpack.c.l.s4 1983009808
        %v762 = vunpack.c.0.s8 %v761
        %v763 = vlaneseq
        %v764 = vshrl.u32 %v763, 7
        %v765 = vsub.s32 %v762, %v764
        %v766 = vrot.slane %v738, %v765
        %v767 = vcombine.high %v766, %v766
        %v769 = vunpack.c.l.s4 1983009808
        %v770 = vunpack.c.0.s8 %v769
        %v771 = vlaneseq
        %v772 = vshrl.u32 %v771, 7
        %v773 = vsub.s32 %v770, %v772
        %v774 = vrot.slane %v739, %v773
        %v775 = vcombine.high %v774, %v774
        %vm776 = vsmask.f32 1280
        %vm777 = vsmask.f32 3336
        %vm778 = vmor %vm776, %vm777
        %vm779 = vsmask.f32 5392
        %vm780 = vmor %vm778, %vm779
        %vm781 = vsmask.f32 7448
        %vm782 = vmor %vm780, %vm781
        %v784 = vshrl.u32 %v750, 16
        %v786 = vrot.slane %v784, 6
        %v787 = vshll.u32 %v750, 16
        %v789 = vrot.slane %v787, 7
        %v790 = vor.u32 %v786, %v789
        %v791 = vrot.slane %v790, 2
        %v793 = vshll.u32 %v751, 16
        %v795 = vrot.slane %v793, 7
        %v796 = vsel %vm782, %v791, %v795
        %v798 = vshrl.u32 %v758, 16
        %v800 = vrot.slane %v798, 6
        %v801 = vshll.u32 %v758, 16
        %v803 = vrot.slane %v801, 7
        %v804 = vor.u32 %v800, %v803
        %v805 = vrot.slane %v804, 2
        %v807 = vshll.u32 %v759, 16
        %v809 = vrot.slane %v807, 7
        %v810 = vsel %vm782, %v805, %v809
        %v812 = vshrl.u32 %v766, 16
        %v814 = vrot.slane %v812, 6
        %v815 = vshll.u32 %v766, 16
        %v817 = vrot.slane %v815, 7
        %v818 = vor.u32 %v814, %v817
        %v819 = vrot.slane %v818, 2
        %v821 = vshll.u32 %v767, 16
        %v823 = vrot.slane %v821, 7
        %v824 = vsel %vm782, %v819, %v823
        %v826 = vshrl.u32 %v774, 16
        %v828 = vrot.slane %v826, 6
        %v829 = vshll.u32 %v774, 16
        %v831 = vrot.slane %v829, 7
        %v832 = vor.u32 %v828, %v831
        %v833 = vrot.slane %v832, 2
        %v835 = vshll.u32 %v775, 16
        %v837 = vrot.slane %v835, 7
        %v838 = vsel %vm782, %v833, %v837
        %v839 = vld [vmem:[%s687] sm:$0x3]
        %v840 = vld [vmem:[%s687 + $0x4] sm:$0x3]
        %v841 = vld [vmem:[%s687 + $0x8] sm:$0x3]
        %v842 = vld [vmem:[%s687 + $0xc] sm:$0x3]
        %v843 = vld [vmem:[%s722] sm:$0x3]
        %v844 = vld [vmem:[%s722 + $0x4] sm:$0x3]
        %v845 = vld [vmem:[%s722 + $0x8] sm:$0x3]
        %v846 = vld [vmem:[%s722 + $0xc] sm:$0x3]
        %v847 = vld [vmem:[%s687] sm:$0x7]
        %v848 = vld [vmem:[%s687 + $0x4] sm:$0x7]
        %v849 = vld [vmem:[%s687 + $0x8] sm:$0x7]
        %v850 = vld [vmem:[%s687 + $0xc] sm:$0x7]
        %v856 = vunpack.c.l.s4 1983009808
        %v857 = vunpack.c.0.s8 %v856
        %v858 = vlaneseq
        %v859 = vshrl.u32 %v858, 7
        %v860 = vsub.s32 %v857, %v859
        %v861 = vrot.slane %v847, %v860
        %v862 = vcombine.high %v861, %v861
        %v864 = vunpack.c.l.s4 1983009808
        %v865 = vunpack.c.0.s8 %v864
        %v866 = vlaneseq
        %v867 = vshrl.u32 %v866, 7
        %v868 = vsub.s32 %v865, %v867
        %v869 = vrot.slane %v848, %v868
        %v870 = vcombine.high %v869, %v869
        %v872 = vunpack.c.l.s4 1983009808
        %v873 = vunpack.c.0.s8 %v872
        %v874 = vlaneseq
        %v875 = vshrl.u32 %v874, 7
        %v876 = vsub.s32 %v873, %v875
        %v877 = vrot.slane %v849, %v876
        %v878 = vcombine.high %v877, %v877
        %v880 = vunpack.c.l.s4 1983009808
        %v881 = vunpack.c.0.s8 %v880
        %v882 = vlaneseq
        %v883 = vshrl.u32 %v882, 7
        %v884 = vsub.s32 %v881, %v883
        %v885 = vrot.slane %v850, %v884
        %v886 = vcombine.high %v885, %v885
        %v888 = vshrl.u32 %v861, 16
        %v890 = vrot.slane %v888, 6
        %v891 = vshll.u32 %v861, 16
        %v893 = vrot.slane %v891, 7
        %v894 = vor.u32 %v890, %v893
        %v895 = vrot.slane %v894, 2
        %v897 = vshll.u32 %v862, 16
        %v899 = vrot.slane %v897, 7
        %v900 = vsel %vm782, %v895, %v899
        %v902 = vshrl.u32 %v869, 16
        %v904 = vrot.slane %v902, 6
        %v905 = vshll.u32 %v869, 16
        %v907 = vrot.slane %v905, 7
        %v908 = vor.u32 %v904, %v907
        %v909 = vrot.slane %v908, 2
        %v911 = vshll.u32 %v870, 16
        %v913 = vrot.slane %v911, 7
        %v914 = vsel %vm782, %v909, %v913
        %v916 = vshrl.u32 %v877, 16
        %v918 = vrot.slane %v916, 6
        %v919 = vshll.u32 %v877, 16
        %v921 = vrot.slane %v919, 7
        %v922 = vor.u32 %v918, %v921
        %v923 = vrot.slane %v922, 2
        %v925 = vshll.u32 %v878, 16
        %v927 = vrot.slane %v925, 7
        %v928 = vsel %vm782, %v923, %v927
        %v930 = vshrl.u32 %v885, 16
        %v932 = vrot.slane %v930, 6
        %v933 = vshll.u32 %v885, 16
        %v935 = vrot.slane %v933, 7
        %v936 = vor.u32 %v932, %v935
        %v937 = vrot.slane %v936, 2
        %v939 = vshll.u32 %v886, 16
        %v941 = vrot.slane %v939, 7
        %v942 = vsel %vm782, %v937, %v941
        %v943 = vld [vmem:[%s566] sm:$0x3]
        %v944 = vld [vmem:[%s566 + $0x4] sm:$0x3]
        %v945 = vld [vmem:[%s566 + $0x8] sm:$0x3]
        %v946 = vld [vmem:[%s566 + $0xc] sm:$0x3]
        %v947 = vld [vmem:[%s603] sm:$0x3]
        %v948 = vld [vmem:[%s603 + $0x4] sm:$0x3]
        %v949 = vld [vmem:[%s603 + $0x8] sm:$0x3]
        %v950 = vld [vmem:[%s603 + $0xc] sm:$0x3]
        %v951 = vld [vmem:[%s566] sm:$0x7]
        %v952 = vld [vmem:[%s566 + $0x4] sm:$0x7]
        %v953 = vld [vmem:[%s566 + $0x8] sm:$0x7]
        %v954 = vld [vmem:[%s566 + $0xc] sm:$0x7]
        %v960 = vunpack.c.l.s4 1983009808
        %v961 = vunpack.c.0.s8 %v960
        %v962 = vlaneseq
        %v963 = vshrl.u32 %v962, 7
        %v964 = vsub.s32 %v961, %v963
        %v965 = vrot.slane %v951, %v964
        %v966 = vcombine.high %v965, %v965
        %v968 = vunpack.c.l.s4 1983009808
        %v969 = vunpack.c.0.s8 %v968
        %v970 = vlaneseq
        %v971 = vshrl.u32 %v970, 7
        %v972 = vsub.s32 %v969, %v971
        %v973 = vrot.slane %v952, %v972
        %v974 = vcombine.high %v973, %v973
        %v976 = vunpack.c.l.s4 1983009808
        %v977 = vunpack.c.0.s8 %v976
        %v978 = vlaneseq
        %v979 = vshrl.u32 %v978, 7
        %v980 = vsub.s32 %v977, %v979
        %v981 = vrot.slane %v953, %v980
        %v982 = vcombine.high %v981, %v981
        %v984 = vunpack.c.l.s4 1983009808
        %v985 = vunpack.c.0.s8 %v984
        %v986 = vlaneseq
        %v987 = vshrl.u32 %v986, 7
        %v988 = vsub.s32 %v985, %v987
        %v989 = vrot.slane %v954, %v988
        %v990 = vcombine.high %v989, %v989
        %v992 = vshrl.u32 %v965, 16
        %v994 = vrot.slane %v992, 6
        %v995 = vshll.u32 %v965, 16
        %v997 = vrot.slane %v995, 7
        %v998 = vor.u32 %v994, %v997
        %v999 = vrot.slane %v998, 2
        %v1001 = vshll.u32 %v966, 16
        %v1003 = vrot.slane %v1001, 7
        %v1004 = vsel %vm782, %v999, %v1003
        %v1006 = vshrl.u32 %v973, 16
        %v1008 = vrot.slane %v1006, 6
        %v1009 = vshll.u32 %v973, 16
        %v1011 = vrot.slane %v1009, 7
        %v1012 = vor.u32 %v1008, %v1011
        %v1013 = vrot.slane %v1012, 2
        %v1015 = vshll.u32 %v974, 16
        %v1017 = vrot.slane %v1015, 7
        %v1018 = vsel %vm782, %v1013, %v1017
        %v1020 = vshrl.u32 %v981, 16
        %v1022 = vrot.slane %v1020, 6
        %v1023 = vshll.u32 %v981, 16
        %v1025 = vrot.slane %v1023, 7
        %v1026 = vor.u32 %v1022, %v1025
        %v1027 = vrot.slane %v1026, 2
        %v1029 = vshll.u32 %v982, 16
        %v1031 = vrot.slane %v1029, 7
        %v1032 = vsel %vm782, %v1027, %v1031
        %v1034 = vshrl.u32 %v989, 16
        %v1036 = vrot.slane %v1034, 6
        %v1037 = vshll.u32 %v989, 16
        %v1039 = vrot.slane %v1037, 7
        %v1040 = vor.u32 %v1036, %v1039
        %v1041 = vrot.slane %v1040, 2
        %v1043 = vshll.u32 %v990, 16
        %v1045 = vrot.slane %v1043, 7
        %v1046 = vsel %vm782, %v1041, %v1045
        %v1051 = vcombine.low %v727, %v728
        %v1052 = vcombine.low %v729, %v730
        %v1054 = vunpack.c.l.s4 1983009808
        %v1055 = vunpack.c.0.s8 %v1054
        %v1056 = vlaneseq
        %v1057 = vshrl.u32 %v1056, 7
        %v1058 = vsub.s32 %v1055, %v1057
        %v1059 = vrot.slane %v1051, %v1058
        %v1061 = vunpack.c.l.s4 1983009808
        %v1062 = vunpack.c.0.s8 %v1061
        %v1063 = vlaneseq
        %v1064 = vshrl.u32 %v1063, 7
        %v1065 = vsub.s32 %v1062, %v1064
        %v1066 = vrot.slane %v1052, %v1065
        %v1067 = vcombine.low %v1059, %v1066
        %v1072 = vcombine.low %v732, %v733
        %v1073 = vcombine.low %v734, %v735
        %v1075 = vunpack.c.l.s4 1983009808
        %v1076 = vunpack.c.0.s8 %v1075
        %v1077 = vlaneseq
        %v1078 = vshrl.u32 %v1077, 7
        %v1079 = vsub.s32 %v1076, %v1078
        %v1080 = vrot.slane %v1072, %v1079
        %v1082 = vunpack.c.l.s4 1983009808
        %v1083 = vunpack.c.0.s8 %v1082
        %v1084 = vlaneseq
        %v1085 = vshrl.u32 %v1084, 7
        %v1086 = vsub.s32 %v1083, %v1085
        %v1087 = vrot.slane %v1073, %v1086
        %v1088 = vcombine.low %v1080, %v1087
        %1089 = vrot.lane.b32.xlu0 %v1088, 4
        %v1090 = vpop.permute.xlu0 %1089
        %v1091 = vcombine.low %v796, %v810
        %v1092 = vcombine.low %v824, %v838
        %v1094 = vunpack.c.l.s4 1983009808
        %v1095 = vunpack.c.0.s8 %v1094
        %v1096 = vlaneseq
        %v1097 = vshrl.u32 %v1096, 7
        %v1098 = vsub.s32 %v1095, %v1097
        %v1099 = vrot.slane %v1091, %v1098
        %v1101 = vunpack.c.l.s4 1983009808
        %v1102 = vunpack.c.0.s8 %v1101
        %v1103 = vlaneseq
        %v1104 = vshrl.u32 %v1103, 7
        %v1105 = vsub.s32 %v1102, %v1104
        %v1106 = vrot.slane %v1092, %v1105
        %v1107 = vcombine.low %v1099, %v1106
        %1108 = vrot.lane.b32.xlu0 %v1107, 8
        %v1109 = vpop.permute.xlu0 %1108
        %v1114 = vcombine.low %v839, %v840
        %v1115 = vcombine.low %v841, %v842
        %v1117 = vunpack.c.l.s4 1983009808
        %v1118 = vunpack.c.0.s8 %v1117
        %v1119 = vlaneseq
        %v1120 = vshrl.u32 %v1119, 7
        %v1121 = vsub.s32 %v1118, %v1120
        %v1122 = vrot.slane %v1114, %v1121
        %v1124 = vunpack.c.l.s4 1983009808
        %v1125 = vunpack.c.0.s8 %v1124
        %v1126 = vlaneseq
        %v1127 = vshrl.u32 %v1126, 7
        %v1128 = vsub.s32 %v1125, %v1127
        %v1129 = vrot.slane %v1115, %v1128
        %v1130 = vcombine.low %v1122, %v1129
        %1131 = vrot.lane.b32.xlu0 %v1130, 12
        %v1132 = vpop.permute.xlu0 %1131
        %v1137 = vcombine.low %v843, %v844
        %v1138 = vcombine.low %v845, %v846
        %v1140 = vunpack.c.l.s4 1983009808
        %v1141 = vunpack.c.0.s8 %v1140
        %v1142 = vlaneseq
        %v1143 = vshrl.u32 %v1142, 7
        %v1144 = vsub.s32 %v1141, %v1143
        %v1145 = vrot.slane %v1137, %v1144
        %v1147 = vunpack.c.l.s4 1983009808
        %v1148 = vunpack.c.0.s8 %v1147
        %v1149 = vlaneseq
        %v1150 = vshrl.u32 %v1149, 7
        %v1151 = vsub.s32 %v1148, %v1150
        %v1152 = vrot.slane %v1138, %v1151
        %v1153 = vcombine.low %v1145, %v1152
        %1154 = vrot.lane.b32.xlu0 %v1153, 16
        %v1155 = vpop.permute.xlu0 %1154
        %v1156 = vcombine.low %v900, %v914
        %v1157 = vcombine.low %v928, %v942
        %v1159 = vunpack.c.l.s4 1983009808
        %v1160 = vunpack.c.0.s8 %v1159
        %v1161 = vlaneseq
        %v1162 = vshrl.u32 %v1161, 7
        %v1163 = vsub.s32 %v1160, %v1162
        %v1164 = vrot.slane %v1156, %v1163
        %v1166 = vunpack.c.l.s4 1983009808
        %v1167 = vunpack.c.0.s8 %v1166
        %v1168 = vlaneseq
        %v1169 = vshrl.u32 %v1168, 7
        %v1170 = vsub.s32 %v1167, %v1169
        %v1171 = vrot.slane %v1157, %v1170
        %v1172 = vcombine.low %v1164, %v1171
        %1173 = vrot.lane.b32.xlu0 %v1172, 20
        %v1174 = vpop.permute.xlu0 %1173
        %v1179 = vcombine.low %v943, %v944
        %v1180 = vcombine.low %v945, %v946
        %v1182 = vunpack.c.l.s4 1983009808
        %v1183 = vunpack.c.0.s8 %v1182
        %v1184 = vlaneseq
        %v1185 = vshrl.u32 %v1184, 7
        %v1186 = vsub.s32 %v1183, %v1185
        %v1187 = vrot.slane %v1179, %v1186
        %v1189 = vunpack.c.l.s4 1983009808
        %v1190 = vunpack.c.0.s8 %v1189
        %v1191 = vlaneseq
        %v1192 = vshrl.u32 %v1191, 7
        %v1193 = vsub.s32 %v1190, %v1192
        %v1194 = vrot.slane %v1180, %v1193
        %v1195 = vcombine.low %v1187, %v1194
        %1196 = vrot.lane.b32.xlu0 %v1195, 24
        %v1197 = vpop.permute.xlu0 %1196
        %v1202 = vcombine.low %v947, %v948
        %v1203 = vcombine.low %v949, %v950
        %v1205 = vunpack.c.l.s4 1983009808
        %v1206 = vunpack.c.0.s8 %v1205
        %v1207 = vlaneseq
        %v1208 = vshrl.u32 %v1207, 7
        %v1209 = vsub.s32 %v1206, %v1208
        %v1210 = vrot.slane %v1202, %v1209
        %v1212 = vunpack.c.l.s4 1983009808
        %v1213 = vunpack.c.0.s8 %v1212
        %v1214 = vlaneseq
        %v1215 = vshrl.u32 %v1214, 7
        %v1216 = vsub.s32 %v1213, %v1215
        %v1217 = vrot.slane %v1203, %v1216
        %v1218 = vcombine.low %v1210, %v1217
        %1219 = vrot.lane.b32.xlu0 %v1218, 28
        %v1220 = vpop.permute.xlu0 %1219
        %v1221 = vcombine.low %v1004, %v1018
        %v1222 = vcombine.low %v1032, %v1046
        %v1224 = vunpack.c.l.s4 1983009808
        %v1225 = vunpack.c.0.s8 %v1224
        %v1226 = vlaneseq
        %v1227 = vshrl.u32 %v1226, 7
        %v1228 = vsub.s32 %v1225, %v1227
        %v1229 = vrot.slane %v1221, %v1228
        %v1231 = vunpack.c.l.s4 1983009808
        %v1232 = vunpack.c.0.s8 %v1231
        %v1233 = vlaneseq
        %v1234 = vshrl.u32 %v1233, 7
        %v1235 = vsub.s32 %v1232, %v1234
        %v1236 = vrot.slane %v1222, %v1235
        %v1237 = vcombine.low %v1229, %v1236
        %1238 = vrot.lane.b32.xlu0 %v1237, 32
        %v1239 = vpop.permute.xlu0 %1238
        %vm1240 = vcmask 31744
        %v1243 = vsel %vm1240, %v1067, %v1090
        %vm1244 = vcmask 64512
        %v1246 = vsel %vm1244, %v1243, %v1109
        %vm1247 = vcmask 97280
        %v1249 = vsel %vm1247, %v1246, %v1132
        %vm1250 = vcmask 130048
        %v1252 = vsel %vm1250, %v1249, %v1155
        %vm1253 = vcmask 162816
        %v1255 = vsel %vm1253, %v1252, %v1174
        %vm1256 = vcmask 195584
        %v1258 = vsel %vm1256, %v1255, %v1197
        %vm1259 = vcmask 228352
        %v1261 = vsel %vm1259, %v1258, %v1220
        %vm1262 = vcmask 261120
        %v1264 = vsel %vm1262, %v1261, %v1239
        %v1265 = vld [vmem:[%s3] sm:$0xf]
        %v1266 = vld [vmem:[%s3 + $0x4] sm:$0xf]
        %v1267 = vld [vmem:[%s3 + $0x8] sm:$0xf]
        %v1268 = vld [vmem:[%s3 + $0xc] sm:$0xf]
        %v1269 = vld [vmem:[%s3 + $0x10] sm:$0x3]
        %v1270 = vld [vmem:[%s4] sm:$0x1]
        %v1272 = vlaneseq
        %v1273 = vshrl.u32 %v1272, 7
        %v1274 = vsub.s32 0, %v1273
        %v1275 = vrot.slane %v1270, %v1274
        %v1282 = vunpack.c.l.b16 %v1265
        %v1283 = vunpack.c.l.b16 %v1266
        %v1284 = vunpack.c.l.b16 %v1267
        %v1285 = vunpack.c.l.b16 %v1268
        %v1286 = vunpack.c.l.b16 %v1269
        %v1287 = vpack.c.b16 %v1283, %v1282
        %v1288 = vpack.c.b16 %v1285, %v1284
        %v1289 = vpack.c.b16 %v1286, %v1286
        %vm1292 = vcmask 293888
        %v1293 = vsel %vm1292, %v1264, 0
        %vm1295 = vcmask 1041408
        %v1297 = vsel %vm1295, %v1289, 0
        %1299 = vmatprep.subr.bf16.mxu0 0
        %1300 = vmatpush1.bf16.msra.mxu0 %v1287
        %1301 = vmatprep.subr.bf16.mxu0 0
        %1302 = vmatpush1.bf16.msra.mxu0 %v1288
        %1303 = vmatprep.subr.bf16.mxu0 0
        %1304 = vmatpush1.bf16.msra.mxu0 %v1297
        %1305 = vmatprep.subr.bf16.mxu0 0
        %1306 = vmatpush1.bf16.msra.mxu0 0
        %1307 = vmatprep.subr.bf16.mxu0 0
        %1308 = vmatpush1.bf16.msra.mxu0 0
        %1309 = vmatprep.subr.bf16.mxu0 0
        %1310 = vmatpush1.bf16.msra.mxu0 0
        %1311 = vmatprep.subr.bf16.mxu0 0
        %1312 = vmatpush1.bf16.msra.mxu0 0
        %1313 = vmatprep.subr.bf16.mxu0 0
        %1314 = vmatpush1.bf16.msra.mxu0 0
        %1315 = vmatprep.subr.bf16.mxu0 0
        %1316 = vmatpush1.bf16.msra.mxu0 0
        %1317 = vmatprep.subr.bf16.mxu0 0
        %1318 = vmatpush1.bf16.msra.mxu0 0
        %1319 = vmatprep.subr.bf16.mxu0 0
        %1320 = vmatpush1.bf16.msra.mxu0 0
        %1321 = vmatprep.subr.bf16.mxu0 0
        %1322 = vmatpush1.bf16.msra.mxu0 0
        %1323 = vmatprep.subr.bf16.mxu0 0
        %1324 = vmatpush1.bf16.msra.mxu0 0
        %1325 = vmatprep.subr.bf16.mxu0 0
        %1326 = vmatpush1.bf16.msra.mxu0 0
        %1327 = vmatprep.subr.bf16.mxu0 0
        %1328 = vmatpush1.bf16.msra.mxu0 0
        %1329 = vmatprep.subr.bf16.mxu0 0
        %1330 = vmatpush1.bf16.msra.mxu0 0
        %1331 = vmatprep.mubr.bf16.mxu0 0
        %1332 = vmatmul.mubr.bf16.gmra.mrb[0].mxu0 %v1293
        %v1333 = vpop.f32.mrb[0].mxu0
        %v1334 = vadd.f32 %v1275, %v1333
        %v1335 = vpop.f32.mrb[0].mxu0
        %v1336 = vpop.f32.mrb[0].mxu0
        %v1337 = vadd.f32 %v1275, %v1336
        %v1338 = vpop.f32.mrb[0].mxu0
        %1339 = vdwg.mxu0
        %v1340 = vmax.f32 %v1334, 0.0
        %v1341 = vmax.f32 %v1337, 0.0
        %v1342 = vpack.c.bf16 %v1341, %v1340
        %v1343 = vld [vmem:[%s5] sm:$0xf]
        %v1344 = vld [vmem:[%s6] sm:$0x1]
        %v1346 = vlaneseq
        %v1347 = vshrl.u32 %v1346, 7
        %v1348 = vsub.s32 0, %v1347
        %v1349 = vrot.slane %v1344, %v1348
        %v1352 = vsel %vm1244, %v1342, 0
        %vm1354 = vcmask 1043456
        %v1356 = vsel %vm1354, %v1343, 0
        %1358 = vmatprep.subr.bf16.mxu0 0
        %1359 = vmatpush1.bf16.msra.mxu0 %v1356
        %1360 = vmatprep.subr.bf16.mxu0 0
        %1361 = vmatpush1.bf16.msra.mxu0 0
        %1362 = vmatprep.subr.bf16.mxu0 0
        %1363 = vmatpush1.bf16.msra.mxu0 0
        %1364 = vmatprep.subr.bf16.mxu0 0
        %1365 = vmatpush1.bf16.msra.mxu0 0
        %1366 = vmatprep.subr.bf16.mxu0 0
        %1367 = vmatpush1.bf16.msra.mxu0 0
        %1368 = vmatprep.subr.bf16.mxu0 0
        %1369 = vmatpush1.bf16.msra.mxu0 0
        %1370 = vmatprep.subr.bf16.mxu0 0
        %1371 = vmatpush1.bf16.msra.mxu0 0
        %1372 = vmatprep.subr.bf16.mxu0 0
        %1373 = vmatpush1.bf16.msra.mxu0 0
        %1374 = vmatprep.subr.bf16.mxu0 0
        %1375 = vmatpush1.bf16.msra.mxu0 0
        %1376 = vmatprep.subr.bf16.mxu0 0
        %1377 = vmatpush1.bf16.msra.mxu0 0
        %1378 = vmatprep.subr.bf16.mxu0 0
        %1379 = vmatpush1.bf16.msra.mxu0 0
        %1380 = vmatprep.subr.bf16.mxu0 0
        %1381 = vmatpush1.bf16.msra.mxu0 0
        %1382 = vmatprep.subr.bf16.mxu0 0
        %1383 = vmatpush1.bf16.msra.mxu0 0
        %1384 = vmatprep.subr.bf16.mxu0 0
        %1385 = vmatpush1.bf16.msra.mxu0 0
        %1386 = vmatprep.subr.bf16.mxu0 0
        %1387 = vmatpush1.bf16.msra.mxu0 0
        %1388 = vmatprep.subr.bf16.mxu0 0
        %1389 = vmatpush1.bf16.msra.mxu0 0
        %1390 = vmatprep.mubr.bf16.mxu0 0
        %1391 = vmatmul.mubr.bf16.gmra.mrb[0].mxu0 %v1352
        %v1392 = vpop.f32.mrb[0].mxu0
        %v1393 = vadd.f32 %v1349, %v1392
        %v1394 = vpop.f32.mrb[0].mxu0
        %v1395 = vpop.f32.mrb[0].mxu0
        %v1396 = vadd.f32 %v1349, %v1395
        %v1397 = vpop.f32.mrb[0].mxu0
        %1398 = vdwg.mxu0
        %1399 = vst.msk [vmem:[%s271] sm:$0xff] %vm1262, %v1393
        %1400 = vst.msk [vmem:[%s271 + $0x8] sm:$0xff] %vm1262, %v1396
        %s1401 = sand.u32 %s181, 1
        %s1402 = scalar_lea.sflag [#allocation4], %s1401
        %s1403 = sand.u32 %s181, 1
        %s1404 = smul.addr %s1403, 16
        %s1405 = scalar_lea.vmem [#allocation3], %s1404
        // Predicated region
        $region49: #{conv_stem_forward.1} parent=47 // pred_check
          %p1406 = pneg %p191
        $region50: #{conv_stem_forward.1} parent=47 // pred_check_branch
          %1408 = sbr.rel (%p1406) target = $region52
        $region51: #{conv_stem_forward.1} parent=47 // pred_region
          %s1410 = ssub.s32 256, 256
          %1411 = vsyncadd %s1402, %s1410
          %s1412 = smul.addr %s21, 2
          %s1413 = smul.addr %s1412, 128
          %s1414 = scalar_lea.hbm %s7, %s1413
          %s1415 = sshll.u32 %s1405, 4
          %s1416 = int_to_ptr.vmem [resolvable:$true] %s1415
          %1421 = dma.vmem_to_hbm [thread:$0]  %s1416, 256, %s1414, %s1402, 128, 128, 8
        $region52: #{conv_stem_forward.1} parent=47 // pred_fallthru
          _
      $region48: #{conv_stem_forward.1} parent=5 // pred_fallthru
        _
      %p1422 = scmp.le.s32.totalorder 2, %s16
      // Predicated region
      $region53: #{conv_stem_forward.1} parent=5 // pred_check
        %p1423 = pneg %p1422
      $region54: #{conv_stem_forward.1} parent=5 // pred_check_branch
        %1425 = sbr.rel (%p1423) target = $region56
      $region55: #{conv_stem_forward.1} parent=5 // pred_region
        %s1426 = ssub.s32 %s16, 2
        // Predicated region
        $region57: #{conv_stem_forward.1} parent=55 // pred_check
          %p1427 = pneg %p197
        $region58: #{conv_stem_forward.1} parent=55 // pred_check_branch
          %1429 = sbr.rel (%p1427) target = $region60
        $region59: #{conv_stem_forward.1} parent=55 // pred_region
          %s1430 = sand.u32 %s182, 1
          %s1431 = scalar_lea.sflag [#allocation4], %s1430
          %s1432 = sand.u32 %s182, 1
          %s1433 = smul.addr %s1432, 16
          %s1434 = scalar_lea.vmem [#allocation3], %s1433
          %1435 = dma.done %s1431, 256
        $region60: #{conv_stem_forward.1} parent=55 // pred_fallthru
          _
      $region56: #{conv_stem_forward.1} parent=5 // pred_fallthru
        _
    $region6: #{conv_stem_forward.1} parent=1 // loop_footer
      %s20 = sadd.s32 1, %s16
    $region7: #{conv_stem_forward.1} parent=1 // loop_footer_branch
      %15 = sbr.rel target = $region3
    $region8: #{conv_stem_forward.1} parent=1 // loop_exit
      _
    %1436 = vsyncpa [#allocation4], 1
    %s1437 = scalar_lea.sflag [#allocation4], 1
    %1438 = vsyncpa %s1437, 1

</llo_original>
